<compile_context>
chip_gen: v7x
topology: tpu7x:2x2x1
jax: 0.10.0
libtpu: 0.0.40
codegen_flags: <defaults>
</compile_context>

<pallas_src>
import functools
import math

import jax
import jax.numpy as jnp
from jax.experimental import pallas as pl
from jax.experimental.pallas import tpu as pltpu

_LANE = 128
_MIN_PALLAS_BYTES = 128 * 1024      # below this, XLA transpose beats a kernel launch
_TARGET_STEP_BYTES = 1 << 20        # aim for >= ~1 MiB moved per grid step


def _sublane(itemsize: int) -> int:
    return max(8, 32 // itemsize)   # 8 f32 / 16 bf16 / 32 int8


@functools.lru_cache(maxsize=1)
def _vmem_params():
    """(tile budget bytes, vmem_limit_bytes), generation aware."""
    try:
        phys = int(pltpu.get_tpu_info().vmem_capacity_bytes)
    except Exception:
        phys = 0
    if phys > 0:
        # ~0.6x physical: ~80 MiB on v5e/v6e (128 MiB VMEM), ~40 MiB on v7x (64 MiB).
        limit = max(32 << 20, min(int(phys * 0.625), 100 << 20))
    else:
        limit = 32 << 20            # conservative fallback, safe on every generation
    budget = limit // 2             # 2 input + 2 output live tiles
    return budget, limit


def _nbytes(x) -> int:
    return math.prod(x.shape) * x.dtype.itemsize


def _cost_estimate(x) -> pl.CostEstimate:
    nbytes = _nbytes(x)
    return pl.CostEstimate(flops=0, transcendentals=0, bytes_accessed=2 * nbytes)


# ----------------------------- kernel bodies ------------------------------- #

def _transpose_kernel(perm, x_ref, o_ref):
    # Relayout one VMEM-resident tile (XLU); tiles are chosen so both blocks
    # keep legal (8,128) last dims -> the kernel stays DMA/store bound.
    o_ref[...] = jnp.transpose(x_ref[...], perm)


def _copy_kernel(x_ref, o_ref):
    # Pure stream: the permutation is done by the BlockSpec index_maps.
    o_ref[...] = x_ref[...]


# ----------------------------- tiling helpers ------------------------------ #

def _axis_alignment(ndim, perm, axis, itemsize):
    """Block granularity along `axis` so the (8,128) rule holds for the input
    block AND for wherever that axis lands in the output block."""
    sub = _sublane(itemsize)
    align = 1
    for pos in (axis, perm.index(axis)):
        if pos == ndim - 1:
            align = max(align, _LANE)
        elif pos == ndim - 2:
            align = max(align, sub)
    return align


def _best_tile(extent, align, per_unit_bytes, max_tile_bytes, requested, want_split):
    """Largest legal tile along an axis: a multiple of `align` (or the full
    extent), sized to the VMEM budget, preferring an even divisor of extent."""
    if requested is not None:
        t = min(int(requested), extent)
        if t < extent:
            t = min(extent, max(align, (t // align) * align))
        return max(t, 1)
    max_elems = max_tile_bytes // max(per_unit_bytes, 1)
    if want_split:                             # try to get >= 2 grid steps (v7x megacore)
        half = (extent // 2) // align * align
        if half >= align:
            max_elems = min(max_elems, half)
    if max_elems >= extent:
        return extent
    if max_elems < align:
        return None
    t = (max_elems // align) * align
    for cand in range(t, align - 1, -align):   # prefer an even divisor (no ragged block)
        if extent % cand == 0:
            return cand
    return t


# ------------------------------- main paths -------------------------------- #

def _permute_tiled(x, perm, requested):
    """Batch-preserving permutes (perm[0] == 0, ndim >= 3): 2-D parallel grid
    over (batch blocks, tiles of one inner axis); jnp.transpose per tile."""
    ndim, shape = x.ndim, x.shape
    itemsize = x.dtype.itemsize
    budget, limit = _vmem_params()
    max_tile_bytes = max(budget // 4, 1)
    slab_bytes = math.prod(shape[1:]) * itemsize
    want_split = shape[0] < 2

    best = None
    for a in range(1, ndim):
        extent = shape[a]
        align = _axis_alignment(ndim, perm, a, itemsize)
        per_unit = max(slab_bytes // extent, 1)
        tile = _best_tile(extent, align, per_unit, max_tile_bytes, requested, want_split)
        if tile is None:
            continue
        n_tiles = -(-extent // tile)
        tile_bytes = per_unit * tile
        if requested is None and tile_bytes > max_tile_bytes:
            continue
        if requested is not None:
            key = (n_tiles >= 2, extent % tile == 0, -n_tiles, -a)
        else:
            key = (shape[0] * n_tiles >= 2, extent % tile == 0, tile_bytes, -a)
        if best is None or key > best[0]:
            best = (key, a, tile, n_tiles, tile_bytes)
    if best is None:
        return None

    _, t_axis, tile, n_tiles, tile_bytes = best
    pos_t = perm.index(t_axis)

    # Batch grouping: push each grid step toward >= ~1 MiB when slabs are
    # small, while keeping >= 2 total grid steps and an even batch split.
    b_blk = 1
    if requested is None and tile_bytes < _TARGET_STEP_BYTES and shape[0] > 1:
        cap = max(1, min(_TARGET_STEP_BYTES // tile_bytes,
                         max_tile_bytes // tile_bytes))
        b_blk = min(shape[0], cap)
        if n_tiles == 1:
            b_blk = min(b_blk, max(1, shape[0] // 2))
        while b_blk > 1 and shape[0] % b_blk != 0:
            b_blk -= 1

    out_shape = tuple(shape[p] for p in perm)
    in_block = tuple(b_blk if a == 0 else (tile if a == t_axis else shape[a])
                     for a in range(ndim))
    out_block = tuple(b_blk if p == 0 else (tile if p == t_axis else shape[p])
                      for p in perm)

    def in_map(b, i):
        idx = [0] * ndim
        idx[0] = b
        idx[t_axis] = i
        return tuple(idx)

    def out_map(b, i):
        idx = [0] * ndim
        idx[0] = b                 # perm[0] == 0: batch stays leading
        idx[pos_t] = i
        return tuple(idx)

    grid = (-(-shape[0] // b_blk), n_tiles)
    return pl.pallas_call(
        functools.partial(_transpose_kernel, perm),
        out_shape=jax.ShapeDtypeStruct(out_shape, x.dtype),
        grid=grid,
        in_specs=[pl.BlockSpec(in_block, in_map)],
        out_specs=pl.BlockSpec(out_block, out_map),
        compiler_params=pltpu.CompilerParams(
            dimension_semantics=("parallel", "parallel"),
            vmem_limit_bytes=limit,
        ),
        cost_estimate=_cost_estimate(x),
    )(x)


def _permute_copy(x, perm, k):
    """Permutes with an unmoved trailing suffix (perm[k:] == range(k, ndim),
    k <= ndim-2): identity-copy kernel, permutation done by the index_maps."""
    ndim, shape = x.ndim, x.shape
    itemsize = x.dtype.itemsize
    budget, limit = _vmem_params()
    max_tile_bytes = max(budget // 4, 1)

    trailing = shape[k:]
    slab_bytes = math.prod(trailing) * itemsize
    w_extent = shape[-1]
    per_unit = max(slab_bytes // w_extent, 1)
    # The last axis is minor in both input and output -> 128-lane granularity.
    tile_w = _best_tile(w_extent, _LANE, per_unit, max_tile_bytes, None, False)
    if tile_w is None:
        return None
    n_w = -(-w_extent // tile_w)

    lead = shape[:k]
    n_lead = math.prod(lead)
    strides = []
    s = 1
    for d in reversed(lead):
        strides.append(s)
        s *= d
    strides = tuple(reversed(strides))      # row-major strides over leading axes

    def _decode(g):
        idx, rem = [], g
        for st in strides:
            idx.append(rem // st)
            rem = rem % st
        return idx

    def in_map(g, w):
        return tuple(_decode(g)) + (0,) * (ndim - k - 1) + (w,)

    def out_map(g, w):
        lead_idx = _decode(g)
        return (tuple(lead_idx[perm[j]] for j in range(k))
                + (0,) * (ndim - k - 1) + (w,))

    block = (1,) * k + trailing[:-1] + (tile_w,)
    out_shape = tuple(shape[p] for p in perm)
    return pl.pallas_call(
        _copy_kernel,
        out_shape=jax.ShapeDtypeStruct(out_shape, x.dtype),
        grid=(n_lead, n_w),
        in_specs=[pl.BlockSpec(block, in_map)],
        out_specs=pl.BlockSpec(block, out_map),
        compiler_params=pltpu.CompilerParams(
            dimension_semantics=("parallel", "parallel"),
            vmem_limit_bytes=limit,
        ),
        cost_estimate=_cost_estimate(x),
    )(x)


def _permute_single_block(x, perm):
    """Generic fallback (perm neither batch-preserving nor suffix-preserving):
    single whole-tensor transpose.  Size-gated by the caller.
    TODO(synk): generalize the tiled path to arbitrary perms (2-D 128-aligned
    grid) so this path also pipelines and feeds both v7x TensorCores."""
    ndim = x.ndim
    _, limit = _vmem_params()
    out_shape = tuple(x.shape[p] for p in perm)
    return pl.pallas_call(
        functools.partial(_transpose_kernel, perm),
        out_shape=jax.ShapeDtypeStruct(out_shape, x.dtype),
        grid=(1,),
        in_specs=[pl.BlockSpec(tuple(x.shape), lambda i: (0,) * ndim)],
        out_specs=pl.BlockSpec(out_shape, lambda i: (0,) * ndim),
        compiler_params=pltpu.CompilerParams(
            dimension_semantics=("arbitrary",),
            vmem_limit_bytes=limit,
        ),
        cost_estimate=_cost_estimate(x),
    )(x)


# -------------------------------- dispatch --------------------------------- #

def _unmoved_suffix_start(perm):
    k = len(perm)
    while k > 0 and perm[k - 1] == k - 1:
        k -= 1
    return k


def permute_pallas(x: jax.Array, perm, *, tile=None, force_pallas=False) -> jax.Array:
    """Pallas equivalent of torch.Tensor.permute(*perm)."""
    perm = tuple(int(p) for p in perm)
    ndim = x.ndim
    assert sorted(perm) == list(range(ndim)), f"bad perm {perm}"
    if perm == tuple(range(ndim)):
        return x

    nbytes = _nbytes(x)
    _, limit = _vmem_params()

    if not force_pallas:
        # Tiny tensors: launch + per-step overhead dominates -> XLA wins.
        if nbytes < _MIN_PALLAS_BYTES:
            return jnp.transpose(x, perm)
        # Lane-density gate: output minor < 128 -> masked vst at
        # shape[perm[-1]]/128 lane fill; prefer XLA (can fuse into the consumer).
        # TODO(synk): fold the permute into the consumer kernel's BlockSpec
        # index_map for the small-C NCHW<->NHWC case instead of materializing it.
        if x.shape[perm[-1]] < _LANE and perm[-1] != ndim - 1:
            return jnp.transpose(x, perm)

    k = _unmoved_suffix_start(perm)
    if 2 <= k <= ndim - 2 and tile is None:
        out = _permute_copy(x, perm, k)
        if out is not None:
            return out

    if ndim >= 3 and perm[0] == 0:
        out = _permute_tiled(x, perm, tile)
        if out is not None:
            return out

    if 4 * nbytes <= int(limit * 0.9):
        return _permute_single_block(x, perm)

    # TODO(synk): no VMEM-feasible Pallas tiling for this perm/shape; XLA fallback.
    return jnp.transpose(x, perm)


class Permute:
    """JAX/Pallas mirror of the PyTorch Permute nn.Module."""

    def __init__(self, *args):
        self.args = tuple(int(a) for a in args)

    def __call__(self, x: jax.Array) -> jax.Array:
        return permute_pallas(x, self.args)


if __name__ == "__main__":
    key = jax.random.PRNGKey(0)
    # Small NCHW input, consistent with how Permute is used around conv blocks.
    x = jax.random.normal(key, (2, 4, 16, 16), dtype=jnp.float32)

    perm = (0, 2, 3, 1)  # NCHW -> NHWC, the permutation mamba_4D wraps convs with
    ref = jnp.transpose(x, perm)

    # Module path: tiny / lane-sparse output -> dispatcher defers to XLA.
    mod = Permute(*perm)
    out_mod = jax.block_until_ready(mod(x))
    assert out_mod.shape == ref.shape and out_mod.dtype == ref.dtype
    assert bool(jnp.array_equal(out_mod, ref))

    # Pallas tiled-transpose path (forced past the tiny/lane-density gates).
    out_pallas = jax.block_until_ready(permute_pallas(x, perm, force_pallas=True))
    assert bool(jnp.array_equal(out_pallas, ref))

    # Multi-step pipelined grid: 2 tiles over H.
    out_tiled = jax.block_until_ready(permute_pallas(x, perm, tile=8, force_pallas=True))
    assert bool(jnp.array_equal(out_tiled, ref))

    # Ragged last tile (H=24, tile=16): masked partial-block writeback.
    x_rag = jax.random.normal(jax.random.PRNGKey(0), (2, 4, 24, 16), jnp.float32)
    out_rag = jax.block_until_ready(permute_pallas(x_rag, perm, tile=16, force_pallas=True))
    assert bool(jnp.array_equal(out_rag, jnp.transpose(x_rag, perm)))

    # Batch-grouped small slabs: >=2 grid steps with a batch block > 1.
    x_b8 = jax.random.normal(jax.random.PRNGKey(0), (8, 4, 16, 16), jnp.float32)
    out_b8 = jax.block_until_ready(permute_pallas(x_b8, perm, force_pallas=True))
    assert bool(jnp.array_equal(out_b8, jnp.transpose(x_b8, perm)))

    # Lane-dense natural dispatch: C = 128 -> output minor 128, unmasked stores.
    x_big = jax.random.normal(jax.random.PRNGKey(0), (2, 128, 16, 16), jnp.float32)
    out_big = jax.block_until_ready(permute_pallas(x_big, perm))
    assert bool(jnp.array_equal(out_big, jnp.transpose(x_big, perm)))

    # Pure-copy path: trailing (H, W) unmoved, index_map does the permutation.
    perm_copy = (1, 0, 2, 3)
    out_copy = jax.block_until_ready(permute_pallas(x, perm_copy, force_pallas=True))
    assert bool(jnp.array_equal(out_copy, jnp.transpose(x, perm_copy)))

    print("KERNEL_OK")
</pallas_src>

<mosaic_0001>
module attributes {stable_mosaic.version = 11 : i64} {
  func.func @_transpose_kernel(%arg0: i32, %arg1: i32, %arg2: memref<1x4x16x16xf32, #tpu.memory_space<vmem>>, %arg3: memref<1x16x16x4xf32, #tpu.memory_space<vmem>>) attributes {dimension_semantics = [#tpu.dimension_semantics<parallel>, #tpu.dimension_semantics<parallel>], iteration_bounds = array<i64: 2, 1>, scalar_prefetch = 0 : i64, scratch_operands = 0 : i64, tpu.core_type = #tpu.core_type<tc>, window_params = [{transform_indices = @transform_0, window_bounds = array<i64: 1, 4, 16, 16>}, {transform_indices = @transform_1, window_bounds = array<i64: 1, 16, 16, 4>}]} {
    %c0 = arith.constant 0 : index
    %c0_0 = arith.constant 0 : index
    %c0_1 = arith.constant 0 : index
    %c0_2 = arith.constant 0 : index
    %0 = vector.load %arg2[%c0, %c0_0, %c0_1, %c0_2] : memref<1x4x16x16xf32, #tpu.memory_space<vmem>>, vector<1x4x16x16xf32>
    %1 = tpu.transpose %0, [0, 2, 3, 1] : vector<1x4x16x16xf32> -> vector<1x16x16x4xf32>
    %c0_3 = arith.constant 0 : index
    %c0_4 = arith.constant 0 : index
    %c0_5 = arith.constant 0 : index
    %c0_6 = arith.constant 0 : index
    %2 = vector.load %arg3[%c0_3, %c0_4, %c0_5, %c0_6] : memref<1x16x16x4xf32, #tpu.memory_space<vmem>>, vector<1x16x16x4xf32>
    tpu.vector_store %arg3[%c0_3, %c0_4, %c0_5, %c0_6], %1 {strides = array<i32>} : memref<1x16x16x4xf32, #tpu.memory_space<vmem>>, vector<1x16x16x4xf32>,
    return
  }
  func.func @transform_0(%arg0: i32, %arg1: i32) -> (i32, i32, i32, i32) {
    %c0_i32 = arith.constant 0 : i32
    %c0_i32_0 = arith.constant 0 : i32
    %c0_i32_1 = arith.constant 0 : i32
    return %arg0, %arg1, %c0_i32, %c0_i32_0 : i32, i32, i32, i32
  }
  func.func @transform_1(%arg0: i32, %arg1: i32) -> (i32, i32, i32, i32) {
    %c0_i32 = arith.constant 0 : i32
    %c0_i32_0 = arith.constant 0 : i32
    %c0_i32_1 = arith.constant 0 : i32
    return %arg0, %c0_i32, %c0_i32_0, %arg1 : i32, i32, i32, i32
  }
}

</mosaic_0001>

<llo_original>
// kernel: tpu_custom_call.1
$region0: #{tpu_custom_call.1}
  #allocation0 [shape = 'u32[]', space=smem, size = 0x4, offset = 0x4, fixed_abs, tag = 'smem constant byte address 0x4 - core index']
  #allocation1 [shape = 'u32[144,128]{1,0:T(1,128)}', space=vmem, size = 0x12000, scoped, tag = 'internal scratch']
  %s0 = inlined_call_operand.hbm [shape: f32[2,4,16,16], index: 0, kind: input, shape index: {}]
  %s1 = inlined_call_operand.vmem [shape: f32[2,16,16,4], index: 1, kind: output, shape index: {}]
  %s2 = sld [smem:[#allocation0]]
  $region41: #{tpu_custom_call.1} parent=0
    _
  %s4 = ssub.s32 1, %s2
  %s5 = scalar_select 0, %s4, %s2
  $region1: #{tpu_custom_call.1} parent=0
    #allocation2 [shape = 'u8[65536]{0}', space=vmem, size = 0x10000, scoped, tag = 'input window, operand 0']
    #allocation3 [shape = 's32[2]{0}', space=sflag, size = 0x8, scoped, tag = 'scoped memory for tpu_custom_call.1']
    %6 = vsyncpa [#allocation3], 0
    %s7 = scalar_lea.sflag [#allocation3], 1
    %8 = vsyncpa %s7, 0
    loop: start=0, step=1, limit=4
    $region2: #{tpu_custom_call.1} parent=1 // loop_pre_header
      _
    $region3: #{tpu_custom_call.1} parent=1 // loop_header
      %s10 = sphi 0, %s14
      %p11 = scmp.ge.s32.totalorder %s10, 4
      %s17 = sphi 0, %s29
      %s18 = sphi 0, %s25
      %s19 = sphi 0, %s17
      %s20 = sphi 0, %s18
      %s21 = sphi 0, %s19
      %s22 = sphi 0, %s20
      %s34 = sphi 0, %s36
      %s37 = sphi 0, %s34
      %s38 = sphi 0, %s37
      %s54 = sphi 0, %s38
      %s62 = sphi 0, %s64
      %s65 = sphi 0, %s62
      %s66 = sphi 0, %s65
      %s82 = sphi 0, %s66
    $region4: #{tpu_custom_call.1} parent=1 // loop_header_branch
      %13 = sbr.rel (%p11) target = $region8
    $region5: #{tpu_custom_call.1} parent=1 // loop_body
      %s15 = ssub.s32 %s10, 1
      %s16 = ssub.s32 %s10, 2
      %s23 = sadd.s32 1, %s18
      %p24 = scmp.ge.s32.totalorder %s23, 1
      %s25 = scalar_select %p24, 0, %s23
      %s26 = sadd.s32 1, %s17
      %s27 = scalar_select %p24, %s26, %s17
      %p28 = scmp.ge.s32.totalorder %s27, 2
      %s29 = scalar_select %p28, 0, %s27
      %s30 = ssub.s32 %s17, %s29
      %s31 = ssub.s32 %s18, %s25
      %s32 = sor.u32 %s30, %s31
      %p33 = scmp.eq.s32.totalorder %s32, 0
      %s35 = sadd.s32 %s34, 1
      %s36 = scalar_select %p33, %s34, %s35
      %p39 = pneg %p33
      %p40 = scmp.eq.s32.totalorder %s10, 1
      %p41 = por %p39, %p40
      %p42 = scmp.ne.s32.totalorder %s34, %s37
      %p43 = scmp.eq.s32.totalorder %s10, 0
      %p44 = por %p42, %p43
      %p45 = scmp.ne.s32.totalorder %s34, %s37
      %p46 = scmp.eq.s32.totalorder %s15, 1
      %p47 = por %p45, %p46
      %p48 = scmp.ne.s32.totalorder %s37, %s38
      %p49 = scmp.eq.s32.totalorder %s15, 0
      %p50 = por %p48, %p49
      %p51 = scmp.ne.s32.totalorder %s37, %s38
      %p52 = scmp.eq.s32.totalorder %s16, 1
      %p53 = por %p51, %p52
      %p55 = scmp.ne.s32.totalorder %s38, %s54
      %p56 = scmp.eq.s32.totalorder %s16, 0
      %p57 = por %p55, %p56
      %s58 = ssub.s32 %s17, %s29
      %s59 = ssub.s32 %s18, %s25
      %s60 = sor.u32 %s58, %s59
      %p61 = scmp.eq.s32.totalorder %s60, 0
      %s63 = sadd.s32 %s62, 1
      %s64 = scalar_select %p61, %s62, %s63
      %p67 = pneg %p61
      %p68 = scmp.eq.s32.totalorder %s10, 1
      %p69 = por %p67, %p68
      %p70 = scmp.ne.s32.totalorder %s62, %s65
      %p71 = scmp.eq.s32.totalorder %s10, 0
      %p72 = por %p70, %p71
      %p73 = scmp.ne.s32.totalorder %s62, %s65
      %p74 = scmp.eq.s32.totalorder %s15, 1
      %p75 = por %p73, %p74
      %p76 = scmp.ne.s32.totalorder %s65, %s66
      %p77 = scmp.eq.s32.totalorder %s15, 0
      %p78 = por %p76, %p77
      %p79 = scmp.ne.s32.totalorder %s65, %s66
      %p80 = scmp.eq.s32.totalorder %s16, 1
      %p81 = por %p79, %p80
      %p83 = scmp.ne.s32.totalorder %s66, %s82
      %p84 = scmp.eq.s32.totalorder %s16, 0
      %p85 = por %p83, %p84
      %p86 = scmp.le.s32.totalorder 1, %s10
      %p87 = scmp.lt.s32.totalorder %s10, 3
      %p88 = pnand %p86, %p87
      %p89 = pneg %p88
      // Predicated region
      $region9: #{tpu_custom_call.1} parent=5 // pred_check
        _
      $region10: #{tpu_custom_call.1} parent=5 // pred_check_branch
        %91 = sbr.rel (%p88) target = $region12
      $region11: #{tpu_custom_call.1} parent=5 // pred_region
        %s92 = ssub.s32 %s10, 1
      $region12: #{tpu_custom_call.1} parent=5 // pred_fallthru
        _
      %p93 = scmp.lt.s32.totalorder %s10, 2
      // Predicated region
      $region13: #{tpu_custom_call.1} parent=5 // pred_check
        %p94 = pneg %p93
      $region14: #{tpu_custom_call.1} parent=5 // pred_check_branch
        %96 = sbr.rel (%p94) target = $region16
      $region15: #{tpu_custom_call.1} parent=5 // pred_region
        // Predicated region
        $region17: #{tpu_custom_call.1} parent=15 // pred_check
          %p97 = pneg %p44
        $region18: #{tpu_custom_call.1} parent=15 // pred_check_branch
          %99 = sbr.rel (%p97) target = $region20
        $region19: #{tpu_custom_call.1} parent=15 // pred_region
          %s100 = sand.u32 %s34, 1
          %s101 = scalar_lea.sflag [#allocation3], %s100
          %s102 = sand.u32 %s34, 1
          %s103 = smul.addr %s102, 64
          %s104 = scalar_lea.vmem [#allocation2], %s103
          %s105 = smul.u32 4, %s18
          %s107 = ssub.s32 1024, 1024
          %108 = vsyncadd %s101, %s107
          %s109 = smul.addr %s105, 2
          %s110 = smul.addr %s17, 8
          %s111 = sadd.s32 %s109, %s110
          %s112 = smul.addr %s111, 128
          %s113 = scalar_lea.hbm %s0, %s112
          %s114 = sshll.u32 %s104, 4
          %s115 = int_to_ptr.vmem [resolvable:$true] %s114
          %120 = dma.hbm_to_vmem [thread:$0]  %s113, 1024, %s115, %s101, 128, 128, 8
        $region20: #{tpu_custom_call.1} parent=15 // pred_fallthru
          _
      $region16: #{tpu_custom_call.1} parent=5 // pred_fallthru
        _
      %p121 = scmp.le.s32.totalorder 1, %s10
      %p122 = scmp.lt.s32.totalorder %s10, 3
      %p123 = pnand %p121, %p122
      %p124 = pneg %p123
      // Predicated region
      $region21: #{tpu_custom_call.1} parent=5 // pred_check
        _
      $region22: #{tpu_custom_call.1} parent=5 // pred_check_branch
        %126 = sbr.rel (%p123) target = $region24
      $region23: #{tpu_custom_call.1} parent=5 // pred_region
        %s127 = ssub.s32 %s10, 1
        %s128 = sand.u32 %s37, 1
        %s129 = scalar_lea.sflag [#allocation3], %s128
        %s130 = sand.u32 %s37, 1
        %s131 = smul.addr %s130, 64
        %s132 = scalar_lea.vmem [#allocation2], %s131
        // Predicated region
        $region25: #{tpu_custom_call.1} parent=23 // pred_check
          %p133 = pneg %p50
        $region26: #{tpu_custom_call.1} parent=23 // pred_check_branch
          %135 = sbr.rel (%p133) target = $region28
        $region27: #{tpu_custom_call.1} parent=23 // pred_region
          %136 = dma.done %s129, 1024
        $region28: #{tpu_custom_call.1} parent=23 // pred_fallthru
          _
        %s137 = sand.u32 %s37, 1
        %s138 = scalar_lea.sflag [#allocation3], %s137
        %s139 = sand.u32 %s37, 1
        %s140 = smul.addr %s139, 64
        %s141 = scalar_lea.vmem [#allocation2], %s140
        %p142 = pneg %p50
        %p143 = pneg %p47
        %p144 = pneg %p78
        %p145 = pneg %p75
        %p146 = scmp.lt.s32.totalorder %s19, 1
        %s147 = scalar_select %p146, %s19, 1
        %p148 = scmp.lt.s32.totalorder %s20, 0
        %s149 = scalar_select %p148, %s20, 0
        %s150 = smul.addr %s147, 32
        %s151 = sadd.s32 %s149, %s150
        %s152 = smul.addr %s151, 8
        %s153 = scalar_lea.vmem %s1, %s152
        %s154 = smul.u32 4, %s20
        %p155 = scmp.lt.s32.totalorder %s19, 1
        %s156 = scalar_select %p155, %s19, 1
        %p157 = scmp.lt.s32.totalorder %s20, 0
        %s158 = scalar_select %p157, %s20, 0
        %s159 = smul.addr %s156, 32
        %s160 = sadd.s32 %s158, %s159
        %s161 = smul.addr %s160, 8
        %s162 = scalar_lea.vmem %s1, %s161
        %v163 = vld [vmem:[%s132] sm:$0xff]
        %v164 = vld [vmem:[%s132 + $0x8] sm:$0xff]
        %v165 = vld [vmem:[%s132 + $0x10] sm:$0xff]
        %v166 = vld [vmem:[%s132 + $0x18] sm:$0xff]
        %v167 = vld [vmem:[%s132 + $0x20] sm:$0xff]
        %v168 = vld [vmem:[%s132 + $0x28] sm:$0xff]
        %v169 = vld [vmem:[%s132 + $0x30] sm:$0xff]
        %v170 = vld [vmem:[%s132 + $0x38] sm:$0xff]
        %171 = vxpose.xlu0.b32.start [1/16] %v163, 128
        %172 = vxpose.xlu0.b32.cont [2/16] %v164, 128
        %173 = vxpose.xlu0.b32.cont [3/16] 0.0, 128
        %174 = vxpose.xlu0.b32.cont [4/16] 0.0, 128
        %175 = vxpose.xlu0.b32.cont [5/16] 0.0, 128
        %176 = vxpose.xlu0.b32.cont [6/16] 0.0, 128
        %177 = vxpose.xlu0.b32.cont [7/16] 0.0, 128
        %178 = vxpose.xlu0.b32.cont [8/16] 0.0, 128
        %179 = vxpose.xlu0.b32.cont [9/16] 0.0, 128
        %180 = vxpose.xlu0.b32.cont [10/16] 0.0, 128
        %181 = vxpose.xlu0.b32.cont [11/16] 0.0, 128
        %182 = vxpose.xlu0.b32.cont [12/16] 0.0, 128
        %183 = vxpose.xlu0.b32.cont [13/16] 0.0, 128
        %184 = vxpose.xlu0.b32.cont [14/16] 0.0, 128
        %185 = vxpose.xlu0.b32.cont [15/16] 0.0, 128
        %186 = vxpose.xlu0.b32.end [16/16] 0.0, 128
        %v187 = vpop.trf.xlu0
        %v188 = vpop.trf.xlu0
        %v189 = vpop.trf.xlu0
        %v190 = vpop.trf.xlu0
        %v191 = vpop.trf.xlu0
        %v192 = vpop.trf.xlu0
        %v193 = vpop.trf.xlu0
        %v194 = vpop.trf.xlu0
        %v195 = vpop.trf.xlu0
        %v196 = vpop.trf.xlu0
        %v197 = vpop.trf.xlu0
        %v198 = vpop.trf.xlu0
        %v199 = vpop.trf.xlu0
        %v200 = vpop.trf.xlu0
        %v201 = vpop.trf.xlu0
        %v202 = vpop.trf.xlu0
        %203 = vxpose.xlu0.b32.start [1/16] %v165, 128
        %204 = vxpose.xlu0.b32.cont [2/16] %v166, 128
        %205 = vxpose.xlu0.b32.cont [3/16] 0.0, 128
        %206 = vxpose.xlu0.b32.cont [4/16] 0.0, 128
        %207 = vxpose.xlu0.b32.cont [5/16] 0.0, 128
        %208 = vxpose.xlu0.b32.cont [6/16] 0.0, 128
        %209 = vxpose.xlu0.b32.cont [7/16] 0.0, 128
        %210 = vxpose.xlu0.b32.cont [8/16] 0.0, 128
        %211 = vxpose.xlu0.b32.cont [9/16] 0.0, 128
        %212 = vxpose.xlu0.b32.cont [10/16] 0.0, 128
        %213 = vxpose.xlu0.b32.cont [11/16] 0.0, 128
        %214 = vxpose.xlu0.b32.cont [12/16] 0.0, 128
        %215 = vxpose.xlu0.b32.cont [13/16] 0.0, 128
        %216 = vxpose.xlu0.b32.cont [14/16] 0.0, 128
        %217 = vxpose.xlu0.b32.cont [15/16] 0.0, 128
        %218 = vxpose.xlu0.b32.end [16/16] 0.0, 128
        %v219 = vpop.trf.xlu0
        %v220 = vpop.trf.xlu0
        %v221 = vpop.trf.xlu0
        %v222 = vpop.trf.xlu0
        %v223 = vpop.trf.xlu0
        %v224 = vpop.trf.xlu0
        %v225 = vpop.trf.xlu0
        %v226 = vpop.trf.xlu0
        %v227 = vpop.trf.xlu0
        %v228 = vpop.trf.xlu0
        %v229 = vpop.trf.xlu0
        %v230 = vpop.trf.xlu0
        %v231 = vpop.trf.xlu0
        %v232 = vpop.trf.xlu0
        %v233 = vpop.trf.xlu0
        %v234 = vpop.trf.xlu0
        %235 = vxpose.xlu0.b32.start [1/16] %v167, 128
        %236 = vxpose.xlu0.b32.cont [2/16] %v168, 128
        %237 = vxpose.xlu0.b32.cont [3/16] 0.0, 128
        %238 = vxpose.xlu0.b32.cont [4/16] 0.0, 128
        %239 = vxpose.xlu0.b32.cont [5/16] 0.0, 128
        %240 = vxpose.xlu0.b32.cont [6/16] 0.0, 128
        %241 = vxpose.xlu0.b32.cont [7/16] 0.0, 128
        %242 = vxpose.xlu0.b32.cont [8/16] 0.0, 128
        %243 = vxpose.xlu0.b32.cont [9/16] 0.0, 128
        %244 = vxpose.xlu0.b32.cont [10/16] 0.0, 128
        %245 = vxpose.xlu0.b32.cont [11/16] 0.0, 128
        %246 = vxpose.xlu0.b32.cont [12/16] 0.0, 128
        %247 = vxpose.xlu0.b32.cont [13/16] 0.0, 128
        %248 = vxpose.xlu0.b32.cont [14/16] 0.0, 128
        %249 = vxpose.xlu0.b32.cont [15/16] 0.0, 128
        %250 = vxpose.xlu0.b32.end [16/16] 0.0, 128
        %v251 = vpop.trf.xlu0
        %v252 = vpop.trf.xlu0
        %v253 = vpop.trf.xlu0
        %v254 = vpop.trf.xlu0
        %v255 = vpop.trf.xlu0
        %v256 = vpop.trf.xlu0
        %v257 = vpop.trf.xlu0
        %v258 = vpop.trf.xlu0
        %v259 = vpop.trf.xlu0
        %v260 = vpop.trf.xlu0
        %v261 = vpop.trf.xlu0
        %v262 = vpop.trf.xlu0
        %v263 = vpop.trf.xlu0
        %v264 = vpop.trf.xlu0
        %v265 = vpop.trf.xlu0
        %v266 = vpop.trf.xlu0
        %267 = vxpose.xlu0.b32.start [1/16] %v169, 128
        %268 = vxpose.xlu0.b32.cont [2/16] %v170, 128
        %269 = vxpose.xlu0.b32.cont [3/16] 0.0, 128
        %270 = vxpose.xlu0.b32.cont [4/16] 0.0, 128
        %271 = vxpose.xlu0.b32.cont [5/16] 0.0, 128
        %272 = vxpose.xlu0.b32.cont [6/16] 0.0, 128
        %273 = vxpose.xlu0.b32.cont [7/16] 0.0, 128
        %274 = vxpose.xlu0.b32.cont [8/16] 0.0, 128
        %275 = vxpose.xlu0.b32.cont [9/16] 0.0, 128
        %276 = vxpose.xlu0.b32.cont [10/16] 0.0, 128
        %277 = vxpose.xlu0.b32.cont [11/16] 0.0, 128
        %278 = vxpose.xlu0.b32.cont [12/16] 0.0, 128
        %279 = vxpose.xlu0.b32.cont [13/16] 0.0, 128
        %280 = vxpose.xlu0.b32.cont [14/16] 0.0, 128
        %281 = vxpose.xlu0.b32.cont [15/16] 0.0, 128
        %282 = vxpose.xlu0.b32.end [16/16] 0.0, 128
        %v283 = vpop.trf.xlu0
        %v284 = vpop.trf.xlu0
        %v285 = vpop.trf.xlu0
        %v286 = vpop.trf.xlu0
        %v287 = vpop.trf.xlu0
        %v288 = vpop.trf.xlu0
        %v289 = vpop.trf.xlu0
        %v290 = vpop.trf.xlu0
        %v291 = vpop.trf.xlu0
        %v292 = vpop.trf.xlu0
        %v293 = vpop.trf.xlu0
        %v294 = vpop.trf.xlu0
        %v295 = vpop.trf.xlu0
        %v296 = vpop.trf.xlu0
        %v297 = vpop.trf.xlu0
        %v298 = vpop.trf.xlu0
        %v299 = vcombine.low %v187, %v251
        %v300 = vcombine.high %v187, %v251
        %v302 = vunpack.c.l.s4 1983009808
        %v303 = vunpack.c.0.s8 %v302
        %v304 = vlaneseq
        %v305 = vshrl.u32 %v304, 7
        %v306 = vsub.s32 %v303, %v305
        %v307 = vrot.slane %v299, %v306
        %v309 = vunpack.c.l.s4 1983009808
        %v310 = vunpack.c.0.s8 %v309
        %v311 = vlaneseq
        %v312 = vshrl.u32 %v311, 7
        %v313 = vsub.s32 %v310, %v312
        %v314 = vrot.slane %v300, %v313
        %v315 = vcombine.low %v219, %v283
        %v316 = vcombine.high %v219, %v283
        %v318 = vunpack.c.l.s4 1983009808
        %v319 = vunpack.c.0.s8 %v318
        %v320 = vlaneseq
        %v321 = vshrl.u32 %v320, 7
        %v322 = vsub.s32 %v319, %v321
        %v323 = vrot.slane %v315, %v322
        %v325 = vunpack.c.l.s4 1983009808
        %v326 = vunpack.c.0.s8 %v325
        %v327 = vlaneseq
        %v328 = vshrl.u32 %v327, 7
        %v329 = vsub.s32 %v326, %v328
        %v330 = vrot.slane %v316, %v329
        %v331 = vcombine.low %v307, %v323
        %v332 = vcombine.high %v307, %v323
        %v334 = vunpack.c.l.s4 1934713408
        %v335 = vunpack.c.0.s8 %v334
        %v336 = vlaneseq
        %v337 = vshrl.u32 %v336, 7
        %v338 = vsub.s32 %v335, %v337
        %v339 = vrot.slane %v331, %v338
        %v341 = vunpack.c.l.s4 1934713408
        %v342 = vunpack.c.0.s8 %v341
        %v343 = vlaneseq
        %v344 = vshrl.u32 %v343, 7
        %v345 = vsub.s32 %v342, %v344
        %v346 = vrot.slane %v332, %v345
        %v347 = vcombine.low %v314, %v330
        %v348 = vcombine.high %v314, %v330
        %v350 = vunpack.c.l.s4 1934713408
        %v351 = vunpack.c.0.s8 %v350
        %v352 = vlaneseq
        %v353 = vshrl.u32 %v352, 7
        %v354 = vsub.s32 %v351, %v353
        %v355 = vrot.slane %v347, %v354
        %v357 = vunpack.c.l.s4 1934713408
        %v358 = vunpack.c.0.s8 %v357
        %v359 = vlaneseq
        %v360 = vshrl.u32 %v359, 7
        %v361 = vsub.s32 %v358, %v360
        %v362 = vrot.slane %v348, %v361
        %v363 = vcombine.high %v339, 0.0
        %v364 = vcombine.high %v346, 0.0
        %v365 = vcombine.high %v355, 0.0
        %v366 = vcombine.high %v362, 0.0
        %v367 = vcombine.low %v188, %v252
        %v368 = vcombine.high %v188, %v252
        %v370 = vunpack.c.l.s4 1983009808
        %v371 = vunpack.c.0.s8 %v370
        %v372 = vlaneseq
        %v373 = vshrl.u32 %v372, 7
        %v374 = vsub.s32 %v371, %v373
        %v375 = vrot.slane %v367, %v374
        %v377 = vunpack.c.l.s4 1983009808
        %v378 = vunpack.c.0.s8 %v377
        %v379 = vlaneseq
        %v380 = vshrl.u32 %v379, 7
        %v381 = vsub.s32 %v378, %v380
        %v382 = vrot.slane %v368, %v381
        %v383 = vcombine.low %v220, %v284
        %v384 = vcombine.high %v220, %v284
        %v386 = vunpack.c.l.s4 1983009808
        %v387 = vunpack.c.0.s8 %v386
        %v388 = vlaneseq
        %v389 = vshrl.u32 %v388, 7
        %v390 = vsub.s32 %v387, %v389
        %v391 = vrot.slane %v383, %v390
        %v393 = vunpack.c.l.s4 1983009808
        %v394 = vunpack.c.0.s8 %v393
        %v395 = vlaneseq
        %v396 = vshrl.u32 %v395, 7
        %v397 = vsub.s32 %v394, %v396
        %v398 = vrot.slane %v384, %v397
        %v399 = vcombine.low %v375, %v391
        %v400 = vcombine.high %v375, %v391
        %v402 = vunpack.c.l.s4 1934713408
        %v403 = vunpack.c.0.s8 %v402
        %v404 = vlaneseq
        %v405 = vshrl.u32 %v404, 7
        %v406 = vsub.s32 %v403, %v405
        %v407 = vrot.slane %v399, %v406
        %v409 = vunpack.c.l.s4 1934713408
        %v410 = vunpack.c.0.s8 %v409
        %v411 = vlaneseq
        %v412 = vshrl.u32 %v411, 7
        %v413 = vsub.s32 %v410, %v412
        %v414 = vrot.slane %v400, %v413
        %v415 = vcombine.low %v382, %v398
        %v416 = vcombine.high %v382, %v398
        %v418 = vunpack.c.l.s4 1934713408
        %v419 = vunpack.c.0.s8 %v418
        %v420 = vlaneseq
        %v421 = vshrl.u32 %v420, 7
        %v422 = vsub.s32 %v419, %v421
        %v423 = vrot.slane %v415, %v422
        %v425 = vunpack.c.l.s4 1934713408
        %v426 = vunpack.c.0.s8 %v425
        %v427 = vlaneseq
        %v428 = vshrl.u32 %v427, 7
        %v429 = vsub.s32 %v426, %v428
        %v430 = vrot.slane %v416, %v429
        %v431 = vcombine.high %v407, 0.0
        %v432 = vcombine.high %v414, 0.0
        %v433 = vcombine.high %v423, 0.0
        %v434 = vcombine.high %v430, 0.0
        %435 = vxpose.xlu0.b32.start [1/16] %v339, 128
        %436 = vxpose.xlu0.b32.cont [2/16] 0.0, 128
        %437 = vxpose.xlu0.b32.cont [3/16] 0.0, 128
        %438 = vxpose.xlu0.b32.cont [4/16] 0.0, 128
        %439 = vxpose.xlu0.b32.cont [5/16] 0.0, 128
        %440 = vxpose.xlu0.b32.cont [6/16] 0.0, 128
        %441 = vxpose.xlu0.b32.cont [7/16] 0.0, 128
        %442 = vxpose.xlu0.b32.cont [8/16] 0.0, 128
        %443 = vxpose.xlu0.b32.cont [9/16] 0.0, 128
        %444 = vxpose.xlu0.b32.cont [10/16] 0.0, 128
        %445 = vxpose.xlu0.b32.cont [11/16] 0.0, 128
        %446 = vxpose.xlu0.b32.cont [12/16] 0.0, 128
        %447 = vxpose.xlu0.b32.cont [13/16] 0.0, 128
        %448 = vxpose.xlu0.b32.cont [14/16] 0.0, 128
        %449 = vxpose.xlu0.b32.cont [15/16] 0.0, 128
        %450 = vxpose.xlu0.b32.end [16/16] 0.0, 128
        %v451 = vpop.trf.xlu0
        %v452 = vpop.trf.xlu0
        %v453 = vpop.trf.xlu0
        %v454 = vpop.trf.xlu0
        %v455 = vpop.trf.xlu0
        %v456 = vpop.trf.xlu0
        %v457 = vpop.trf.xlu0
        %v458 = vpop.trf.xlu0
        %v459 = vpop.trf.xlu0
        %v460 = vpop.trf.xlu0
        %v461 = vpop.trf.xlu0
        %v462 = vpop.trf.xlu0
        %v463 = vpop.trf.xlu0
        %v464 = vpop.trf.xlu0
        %v465 = vpop.trf.xlu0
        %v466 = vpop.trf.xlu0
        %467 = vxpose.xlu0.b32.start [1/16] %v363, 128
        %468 = vxpose.xlu0.b32.cont [2/16] 0.0, 128
        %469 = vxpose.xlu0.b32.cont [3/16] 0.0, 128
        %470 = vxpose.xlu0.b32.cont [4/16] 0.0, 128
        %471 = vxpose.xlu0.b32.cont [5/16] 0.0, 128
        %472 = vxpose.xlu0.b32.cont [6/16] 0.0, 128
        %473 = vxpose.xlu0.b32.cont [7/16] 0.0, 128
        %474 = vxpose.xlu0.b32.cont [8/16] 0.0, 128
        %475 = vxpose.xlu0.b32.cont [9/16] 0.0, 128
        %476 = vxpose.xlu0.b32.cont [10/16] 0.0, 128
        %477 = vxpose.xlu0.b32.cont [11/16] 0.0, 128
        %478 = vxpose.xlu0.b32.cont [12/16] 0.0, 128
        %479 = vxpose.xlu0.b32.cont [13/16] 0.0, 128
        %480 = vxpose.xlu0.b32.cont [14/16] 0.0, 128
        %481 = vxpose.xlu0.b32.cont [15/16] 0.0, 128
        %482 = vxpose.xlu0.b32.end [16/16] 0.0, 128
        %v483 = vpop.trf.xlu0
        %v484 = vpop.trf.xlu0
        %v485 = vpop.trf.xlu0
        %v486 = vpop.trf.xlu0
        %v487 = vpop.trf.xlu0
        %v488 = vpop.trf.xlu0
        %v489 = vpop.trf.xlu0
        %v490 = vpop.trf.xlu0
        %v491 = vpop.trf.xlu0
        %v492 = vpop.trf.xlu0
        %v493 = vpop.trf.xlu0
        %v494 = vpop.trf.xlu0
        %v495 = vpop.trf.xlu0
        %v496 = vpop.trf.xlu0
        %v497 = vpop.trf.xlu0
        %v498 = vpop.trf.xlu0
        %499 = vxpose.xlu0.b32.start [1/16] %v346, 128
        %500 = vxpose.xlu0.b32.cont [2/16] 0.0, 128
        %501 = vxpose.xlu0.b32.cont [3/16] 0.0, 128
        %502 = vxpose.xlu0.b32.cont [4/16] 0.0, 128
        %503 = vxpose.xlu0.b32.cont [5/16] 0.0, 128
        %504 = vxpose.xlu0.b32.cont [6/16] 0.0, 128
        %505 = vxpose.xlu0.b32.cont [7/16] 0.0, 128
        %506 = vxpose.xlu0.b32.cont [8/16] 0.0, 128
        %507 = vxpose.xlu0.b32.cont [9/16] 0.0, 128
        %508 = vxpose.xlu0.b32.cont [10/16] 0.0, 128
        %509 = vxpose.xlu0.b32.cont [11/16] 0.0, 128
        %510 = vxpose.xlu0.b32.cont [12/16] 0.0, 128
        %511 = vxpose.xlu0.b32.cont [13/16] 0.0, 128
        %512 = vxpose.xlu0.b32.cont [14/16] 0.0, 128
        %513 = vxpose.xlu0.b32.cont [15/16] 0.0, 128
        %514 = vxpose.xlu0.b32.end [16/16] 0.0, 128
        %v515 = vpop.trf.xlu0
        %v516 = vpop.trf.xlu0
        %v517 = vpop.trf.xlu0
        %v518 = vpop.trf.xlu0
        %v519 = vpop.trf.xlu0
        %v520 = vpop.trf.xlu0
        %v521 = vpop.trf.xlu0
        %v522 = vpop.trf.xlu0
        %v523 = vpop.trf.xlu0
        %v524 = vpop.trf.xlu0
        %v525 = vpop.trf.xlu0
        %v526 = vpop.trf.xlu0
        %v527 = vpop.trf.xlu0
        %v528 = vpop.trf.xlu0
        %v529 = vpop.trf.xlu0
        %v530 = vpop.trf.xlu0
        %531 = vxpose.xlu0.b32.start [1/16] %v364, 128
        %532 = vxpose.xlu0.b32.cont [2/16] 0.0, 128
        %533 = vxpose.xlu0.b32.cont [3/16] 0.0, 128
        %534 = vxpose.xlu0.b32.cont [4/16] 0.0, 128
        %535 = vxpose.xlu0.b32.cont [5/16] 0.0, 128
        %536 = vxpose.xlu0.b32.cont [6/16] 0.0, 128
        %537 = vxpose.xlu0.b32.cont [7/16] 0.0, 128
        %538 = vxpose.xlu0.b32.cont [8/16] 0.0, 128
        %539 = vxpose.xlu0.b32.cont [9/16] 0.0, 128
        %540 = vxpose.xlu0.b32.cont [10/16] 0.0, 128
        %541 = vxpose.xlu0.b32.cont [11/16] 0.0, 128
        %542 = vxpose.xlu0.b32.cont [12/16] 0.0, 128
        %543 = vxpose.xlu0.b32.cont [13/16] 0.0, 128
        %544 = vxpose.xlu0.b32.cont [14/16] 0.0, 128
        %545 = vxpose.xlu0.b32.cont [15/16] 0.0, 128
        %546 = vxpose.xlu0.b32.end [16/16] 0.0, 128
        %v547 = vpop.trf.xlu0
        %v548 = vpop.trf.xlu0
        %v549 = vpop.trf.xlu0
        %v550 = vpop.trf.xlu0
        %v551 = vpop.trf.xlu0
        %v552 = vpop.trf.xlu0
        %v553 = vpop.trf.xlu0
        %v554 = vpop.trf.xlu0
        %v555 = vpop.trf.xlu0
        %v556 = vpop.trf.xlu0
        %v557 = vpop.trf.xlu0
        %v558 = vpop.trf.xlu0
        %v559 = vpop.trf.xlu0
        %v560 = vpop.trf.xlu0
        %v561 = vpop.trf.xlu0
        %v562 = vpop.trf.xlu0
        %563 = vxpose.xlu0.b32.start [1/16] %v355, 128
        %564 = vxpose.xlu0.b32.cont [2/16] 0.0, 128
        %565 = vxpose.xlu0.b32.cont [3/16] 0.0, 128
        %566 = vxpose.xlu0.b32.cont [4/16] 0.0, 128
        %567 = vxpose.xlu0.b32.cont [5/16] 0.0, 128
        %568 = vxpose.xlu0.b32.cont [6/16] 0.0, 128
        %569 = vxpose.xlu0.b32.cont [7/16] 0.0, 128
        %570 = vxpose.xlu0.b32.cont [8/16] 0.0, 128
        %571 = vxpose.xlu0.b32.cont [9/16] 0.0, 128
        %572 = vxpose.xlu0.b32.cont [10/16] 0.0, 128
        %573 = vxpose.xlu0.b32.cont [11/16] 0.0, 128
        %574 = vxpose.xlu0.b32.cont [12/16] 0.0, 128
        %575 = vxpose.xlu0.b32.cont [13/16] 0.0, 128
        %576 = vxpose.xlu0.b32.cont [14/16] 0.0, 128
        %577 = vxpose.xlu0.b32.cont [15/16] 0.0, 128
        %578 = vxpose.xlu0.b32.end [16/16] 0.0, 128
        %v579 = vpop.trf.xlu0
        %v580 = vpop.trf.xlu0
        %v581 = vpop.trf.xlu0
        %v582 = vpop.trf.xlu0
        %v583 = vpop.trf.xlu0
        %v584 = vpop.trf.xlu0
        %v585 = vpop.trf.xlu0
        %v586 = vpop.trf.xlu0
        %v587 = vpop.trf.xlu0
        %v588 = vpop.trf.xlu0
        %v589 = vpop.trf.xlu0
        %v590 = vpop.trf.xlu0
        %v591 = vpop.trf.xlu0
        %v592 = vpop.trf.xlu0
        %v593 = vpop.trf.xlu0
        %v594 = vpop.trf.xlu0
        %595 = vxpose.xlu0.b32.start [1/16] %v365, 128
        %596 = vxpose.xlu0.b32.cont [2/16] 0.0, 128
        %597 = vxpose.xlu0.b32.cont [3/16] 0.0, 128
        %598 = vxpose.xlu0.b32.cont [4/16] 0.0, 128
        %599 = vxpose.xlu0.b32.cont [5/16] 0.0, 128
        %600 = vxpose.xlu0.b32.cont [6/16] 0.0, 128
        %601 = vxpose.xlu0.b32.cont [7/16] 0.0, 128
        %602 = vxpose.xlu0.b32.cont [8/16] 0.0, 128
        %603 = vxpose.xlu0.b32.cont [9/16] 0.0, 128
        %604 = vxpose.xlu0.b32.cont [10/16] 0.0, 128
        %605 = vxpose.xlu0.b32.cont [11/16] 0.0, 128
        %606 = vxpose.xlu0.b32.cont [12/16] 0.0, 128
        %607 = vxpose.xlu0.b32.cont [13/16] 0.0, 128
        %608 = vxpose.xlu0.b32.cont [14/16] 0.0, 128
        %609 = vxpose.xlu0.b32.cont [15/16] 0.0, 128
        %610 = vxpose.xlu0.b32.end [16/16] 0.0, 128
        %v611 = vpop.trf.xlu0
        %v612 = vpop.trf.xlu0
        %v613 = vpop.trf.xlu0
        %v614 = vpop.trf.xlu0
        %v615 = vpop.trf.xlu0
        %v616 = vpop.trf.xlu0
        %v617 = vpop.trf.xlu0
        %v618 = vpop.trf.xlu0
        %v619 = vpop.trf.xlu0
        %v620 = vpop.trf.xlu0
        %v621 = vpop.trf.xlu0
        %v622 = vpop.trf.xlu0
        %v623 = vpop.trf.xlu0
        %v624 = vpop.trf.xlu0
        %v625 = vpop.trf.xlu0
        %v626 = vpop.trf.xlu0
        %627 = vxpose.xlu0.b32.start [1/16] %v362, 128
        %628 = vxpose.xlu0.b32.cont [2/16] 0.0, 128
        %629 = vxpose.xlu0.b32.cont [3/16] 0.0, 128
        %630 = vxpose.xlu0.b32.cont [4/16] 0.0, 128
        %631 = vxpose.xlu0.b32.cont [5/16] 0.0, 128
        %632 = vxpose.xlu0.b32.cont [6/16] 0.0, 128
        %633 = vxpose.xlu0.b32.cont [7/16] 0.0, 128
        %634 = vxpose.xlu0.b32.cont [8/16] 0.0, 128
        %635 = vxpose.xlu0.b32.cont [9/16] 0.0, 128
        %636 = vxpose.xlu0.b32.cont [10/16] 0.0, 128
        %637 = vxpose.xlu0.b32.cont [11/16] 0.0, 128
        %638 = vxpose.xlu0.b32.cont [12/16] 0.0, 128
        %639 = vxpose.xlu0.b32.cont [13/16] 0.0, 128
        %640 = vxpose.xlu0.b32.cont [14/16] 0.0, 128
        %641 = vxpose.xlu0.b32.cont [15/16] 0.0, 128
        %642 = vxpose.xlu0.b32.end [16/16] 0.0, 128
        %v643 = vpop.trf.xlu0
        %v644 = vpop.trf.xlu0
        %v645 = vpop.trf.xlu0
        %v646 = vpop.trf.xlu0
        %v647 = vpop.trf.xlu0
        %v648 = vpop.trf.xlu0
        %v649 = vpop.trf.xlu0
        %v650 = vpop.trf.xlu0
        %v651 = vpop.trf.xlu0
        %v652 = vpop.trf.xlu0
        %v653 = vpop.trf.xlu0
        %v654 = vpop.trf.xlu0
        %v655 = vpop.trf.xlu0
        %v656 = vpop.trf.xlu0
        %v657 = vpop.trf.xlu0
        %v658 = vpop.trf.xlu0
        %659 = vxpose.xlu0.b32.start [1/16] %v366, 128
        %660 = vxpose.xlu0.b32.cont [2/16] 0.0, 128
        %661 = vxpose.xlu0.b32.cont [3/16] 0.0, 128
        %662 = vxpose.xlu0.b32.cont [4/16] 0.0, 128
        %663 = vxpose.xlu0.b32.cont [5/16] 0.0, 128
        %664 = vxpose.xlu0.b32.cont [6/16] 0.0, 128
        %665 = vxpose.xlu0.b32.cont [7/16] 0.0, 128
        %666 = vxpose.xlu0.b32.cont [8/16] 0.0, 128
        %667 = vxpose.xlu0.b32.cont [9/16] 0.0, 128
        %668 = vxpose.xlu0.b32.cont [10/16] 0.0, 128
        %669 = vxpose.xlu0.b32.cont [11/16] 0.0, 128
        %670 = vxpose.xlu0.b32.cont [12/16] 0.0, 128
        %671 = vxpose.xlu0.b32.cont [13/16] 0.0, 128
        %672 = vxpose.xlu0.b32.cont [14/16] 0.0, 128
        %673 = vxpose.xlu0.b32.cont [15/16] 0.0, 128
        %674 = vxpose.xlu0.b32.end [16/16] 0.0, 128
        %v675 = vpop.trf.xlu0
        %v676 = vpop.trf.xlu0
        %v677 = vpop.trf.xlu0
        %v678 = vpop.trf.xlu0
        %v679 = vpop.trf.xlu0
        %v680 = vpop.trf.xlu0
        %v681 = vpop.trf.xlu0
        %v682 = vpop.trf.xlu0
        %v683 = vpop.trf.xlu0
        %v684 = vpop.trf.xlu0
        %v685 = vpop.trf.xlu0
        %v686 = vpop.trf.xlu0
        %v687 = vpop.trf.xlu0
        %v688 = vpop.trf.xlu0
        %v689 = vpop.trf.xlu0
        %v690 = vpop.trf.xlu0
        %691 = vxpose.xlu0.b32.start [1/16] %v407, 128
        %692 = vxpose.xlu0.b32.cont [2/16] 0.0, 128
        %693 = vxpose.xlu0.b32.cont [3/16] 0.0, 128
        %694 = vxpose.xlu0.b32.cont [4/16] 0.0, 128
        %695 = vxpose.xlu0.b32.cont [5/16] 0.0, 128
        %696 = vxpose.xlu0.b32.cont [6/16] 0.0, 128
        %697 = vxpose.xlu0.b32.cont [7/16] 0.0, 128
        %698 = vxpose.xlu0.b32.cont [8/16] 0.0, 128
        %699 = vxpose.xlu0.b32.cont [9/16] 0.0, 128
        %700 = vxpose.xlu0.b32.cont [10/16] 0.0, 128
        %701 = vxpose.xlu0.b32.cont [11/16] 0.0, 128
        %702 = vxpose.xlu0.b32.cont [12/16] 0.0, 128
        %703 = vxpose.xlu0.b32.cont [13/16] 0.0, 128
        %704 = vxpose.xlu0.b32.cont [14/16] 0.0, 128
        %705 = vxpose.xlu0.b32.cont [15/16] 0.0, 128
        %706 = vxpose.xlu0.b32.end [16/16] 0.0, 128
        %v707 = vpop.trf.xlu0
        %v708 = vpop.trf.xlu0
        %v709 = vpop.trf.xlu0
        %v710 = vpop.trf.xlu0
        %v711 = vpop.trf.xlu0
        %v712 = vpop.trf.xlu0
        %v713 = vpop.trf.xlu0
        %v714 = vpop.trf.xlu0
        %v715 = vpop.trf.xlu0
        %v716 = vpop.trf.xlu0
        %v717 = vpop.trf.xlu0
        %v718 = vpop.trf.xlu0
        %v719 = vpop.trf.xlu0
        %v720 = vpop.trf.xlu0
        %v721 = vpop.trf.xlu0
        %v722 = vpop.trf.xlu0
        %723 = vxpose.xlu0.b32.start [1/16] %v431, 128
        %724 = vxpose.xlu0.b32.cont [2/16] 0.0, 128
        %725 = vxpose.xlu0.b32.cont [3/16] 0.0, 128
        %726 = vxpose.xlu0.b32.cont [4/16] 0.0, 128
        %727 = vxpose.xlu0.b32.cont [5/16] 0.0, 128
        %728 = vxpose.xlu0.b32.cont [6/16] 0.0, 128
        %729 = vxpose.xlu0.b32.cont [7/16] 0.0, 128
        %730 = vxpose.xlu0.b32.cont [8/16] 0.0, 128
        %731 = vxpose.xlu0.b32.cont [9/16] 0.0, 128
        %732 = vxpose.xlu0.b32.cont [10/16] 0.0, 128
        %733 = vxpose.xlu0.b32.cont [11/16] 0.0, 128
        %734 = vxpose.xlu0.b32.cont [12/16] 0.0, 128
        %735 = vxpose.xlu0.b32.cont [13/16] 0.0, 128
        %736 = vxpose.xlu0.b32.cont [14/16] 0.0, 128
        %737 = vxpose.xlu0.b32.cont [15/16] 0.0, 128
        %738 = vxpose.xlu0.b32.end [16/16] 0.0, 128
        %v739 = vpop.trf.xlu0
        %v740 = vpop.trf.xlu0
        %v741 = vpop.trf.xlu0
        %v742 = vpop.trf.xlu0
        %v743 = vpop.trf.xlu0
        %v744 = vpop.trf.xlu0
        %v745 = vpop.trf.xlu0
        %v746 = vpop.trf.xlu0
        %v747 = vpop.trf.xlu0
        %v748 = vpop.trf.xlu0
        %v749 = vpop.trf.xlu0
        %v750 = vpop.trf.xlu0
        %v751 = vpop.trf.xlu0
        %v752 = vpop.trf.xlu0
        %v753 = vpop.trf.xlu0
        %v754 = vpop.trf.xlu0
        %755 = vxpose.xlu0.b32.start [1/16] %v414, 128
        %756 = vxpose.xlu0.b32.cont [2/16] 0.0, 128
        %757 = vxpose.xlu0.b32.cont [3/16] 0.0, 128
        %758 = vxpose.xlu0.b32.cont [4/16] 0.0, 128
        %759 = vxpose.xlu0.b32.cont [5/16] 0.0, 128
        %760 = vxpose.xlu0.b32.cont [6/16] 0.0, 128
        %761 = vxpose.xlu0.b32.cont [7/16] 0.0, 128
        %762 = vxpose.xlu0.b32.cont [8/16] 0.0, 128
        %763 = vxpose.xlu0.b32.cont [9/16] 0.0, 128
        %764 = vxpose.xlu0.b32.cont [10/16] 0.0, 128
        %765 = vxpose.xlu0.b32.cont [11/16] 0.0, 128
        %766 = vxpose.xlu0.b32.cont [12/16] 0.0, 128
        %767 = vxpose.xlu0.b32.cont [13/16] 0.0, 128
        %768 = vxpose.xlu0.b32.cont [14/16] 0.0, 128
        %769 = vxpose.xlu0.b32.cont [15/16] 0.0, 128
        %770 = vxpose.xlu0.b32.end [16/16] 0.0, 128
        %v771 = vpop.trf.xlu0
        %v772 = vpop.trf.xlu0
        %v773 = vpop.trf.xlu0
        %v774 = vpop.trf.xlu0
        %v775 = vpop.trf.xlu0
        %v776 = vpop.trf.xlu0
        %v777 = vpop.trf.xlu0
        %v778 = vpop.trf.xlu0
        %v779 = vpop.trf.xlu0
        %v780 = vpop.trf.xlu0
        %v781 = vpop.trf.xlu0
        %v782 = vpop.trf.xlu0
        %v783 = vpop.trf.xlu0
        %v784 = vpop.trf.xlu0
        %v785 = vpop.trf.xlu0
        %v786 = vpop.trf.xlu0
        %787 = vxpose.xlu0.b32.start [1/16] %v432, 128
        %788 = vxpose.xlu0.b32.cont [2/16] 0.0, 128
        %789 = vxpose.xlu0.b32.cont [3/16] 0.0, 128
        %790 = vxpose.xlu0.b32.cont [4/16] 0.0, 128
        %791 = vxpose.xlu0.b32.cont [5/16] 0.0, 128
        %792 = vxpose.xlu0.b32.cont [6/16] 0.0, 128
        %793 = vxpose.xlu0.b32.cont [7/16] 0.0, 128
        %794 = vxpose.xlu0.b32.cont [8/16] 0.0, 128
        %795 = vxpose.xlu0.b32.cont [9/16] 0.0, 128
        %796 = vxpose.xlu0.b32.cont [10/16] 0.0, 128
        %797 = vxpose.xlu0.b32.cont [11/16] 0.0, 128
        %798 = vxpose.xlu0.b32.cont [12/16] 0.0, 128
        %799 = vxpose.xlu0.b32.cont [13/16] 0.0, 128
        %800 = vxpose.xlu0.b32.cont [14/16] 0.0, 128
        %801 = vxpose.xlu0.b32.cont [15/16] 0.0, 128
        %802 = vxpose.xlu0.b32.end [16/16] 0.0, 128
        %v803 = vpop.trf.xlu0
        %v804 = vpop.trf.xlu0
        %v805 = vpop.trf.xlu0
        %v806 = vpop.trf.xlu0
        %v807 = vpop.trf.xlu0
        %v808 = vpop.trf.xlu0
        %v809 = vpop.trf.xlu0
        %v810 = vpop.trf.xlu0
        %v811 = vpop.trf.xlu0
        %v812 = vpop.trf.xlu0
        %v813 = vpop.trf.xlu0
        %v814 = vpop.trf.xlu0
        %v815 = vpop.trf.xlu0
        %v816 = vpop.trf.xlu0
        %v817 = vpop.trf.xlu0
        %v818 = vpop.trf.xlu0
        %819 = vxpose.xlu0.b32.start [1/16] %v423, 128
        %820 = vxpose.xlu0.b32.cont [2/16] 0.0, 128
        %821 = vxpose.xlu0.b32.cont [3/16] 0.0, 128
        %822 = vxpose.xlu0.b32.cont [4/16] 0.0, 128
        %823 = vxpose.xlu0.b32.cont [5/16] 0.0, 128
        %824 = vxpose.xlu0.b32.cont [6/16] 0.0, 128
        %825 = vxpose.xlu0.b32.cont [7/16] 0.0, 128
        %826 = vxpose.xlu0.b32.cont [8/16] 0.0, 128
        %827 = vxpose.xlu0.b32.cont [9/16] 0.0, 128
        %828 = vxpose.xlu0.b32.cont [10/16] 0.0, 128
        %829 = vxpose.xlu0.b32.cont [11/16] 0.0, 128
        %830 = vxpose.xlu0.b32.cont [12/16] 0.0, 128
        %831 = vxpose.xlu0.b32.cont [13/16] 0.0, 128
        %832 = vxpose.xlu0.b32.cont [14/16] 0.0, 128
        %833 = vxpose.xlu0.b32.cont [15/16] 0.0, 128
        %834 = vxpose.xlu0.b32.end [16/16] 0.0, 128
        %v835 = vpop.trf.xlu0
        %v836 = vpop.trf.xlu0
        %v837 = vpop.trf.xlu0
        %v838 = vpop.trf.xlu0
        %v839 = vpop.trf.xlu0
        %v840 = vpop.trf.xlu0
        %v841 = vpop.trf.xlu0
        %v842 = vpop.trf.xlu0
        %v843 = vpop.trf.xlu0
        %v844 = vpop.trf.xlu0
        %v845 = vpop.trf.xlu0
        %v846 = vpop.trf.xlu0
        %v847 = vpop.trf.xlu0
        %v848 = vpop.trf.xlu0
        %v849 = vpop.trf.xlu0
        %v850 = vpop.trf.xlu0
        %851 = vxpose.xlu0.b32.start [1/16] %v433, 128
        %852 = vxpose.xlu0.b32.cont [2/16] 0.0, 128
        %853 = vxpose.xlu0.b32.cont [3/16] 0.0, 128
        %854 = vxpose.xlu0.b32.cont [4/16] 0.0, 128
        %855 = vxpose.xlu0.b32.cont [5/16] 0.0, 128
        %856 = vxpose.xlu0.b32.cont [6/16] 0.0, 128
        %857 = vxpose.xlu0.b32.cont [7/16] 0.0, 128
        %858 = vxpose.xlu0.b32.cont [8/16] 0.0, 128
        %859 = vxpose.xlu0.b32.cont [9/16] 0.0, 128
        %860 = vxpose.xlu0.b32.cont [10/16] 0.0, 128
        %861 = vxpose.xlu0.b32.cont [11/16] 0.0, 128
        %862 = vxpose.xlu0.b32.cont [12/16] 0.0, 128
        %863 = vxpose.xlu0.b32.cont [13/16] 0.0, 128
        %864 = vxpose.xlu0.b32.cont [14/16] 0.0, 128
        %865 = vxpose.xlu0.b32.cont [15/16] 0.0, 128
        %866 = vxpose.xlu0.b32.end [16/16] 0.0, 128
        %v867 = vpop.trf.xlu0
        %v868 = vpop.trf.xlu0
        %v869 = vpop.trf.xlu0
        %v870 = vpop.trf.xlu0
        %v871 = vpop.trf.xlu0
        %v872 = vpop.trf.xlu0
        %v873 = vpop.trf.xlu0
        %v874 = vpop.trf.xlu0
        %v875 = vpop.trf.xlu0
        %v876 = vpop.trf.xlu0
        %v877 = vpop.trf.xlu0
        %v878 = vpop.trf.xlu0
        %v879 = vpop.trf.xlu0
        %v880 = vpop.trf.xlu0
        %v881 = vpop.trf.xlu0
        %v882 = vpop.trf.xlu0
        %883 = vxpose.xlu0.b32.start [1/16] %v430, 128
        %884 = vxpose.xlu0.b32.cont [2/16] 0.0, 128
        %885 = vxpose.xlu0.b32.cont [3/16] 0.0, 128
        %886 = vxpose.xlu0.b32.cont [4/16] 0.0, 128
        %887 = vxpose.xlu0.b32.cont [5/16] 0.0, 128
        %888 = vxpose.xlu0.b32.cont [6/16] 0.0, 128
        %889 = vxpose.xlu0.b32.cont [7/16] 0.0, 128
        %890 = vxpose.xlu0.b32.cont [8/16] 0.0, 128
        %891 = vxpose.xlu0.b32.cont [9/16] 0.0, 128
        %892 = vxpose.xlu0.b32.cont [10/16] 0.0, 128
        %893 = vxpose.xlu0.b32.cont [11/16] 0.0, 128
        %894 = vxpose.xlu0.b32.cont [12/16] 0.0, 128
        %895 = vxpose.xlu0.b32.cont [13/16] 0.0, 128
        %896 = vxpose.xlu0.b32.cont [14/16] 0.0, 128
        %897 = vxpose.xlu0.b32.cont [15/16] 0.0, 128
        %898 = vxpose.xlu0.b32.end [16/16] 0.0, 128
        %v899 = vpop.trf.xlu0
        %v900 = vpop.trf.xlu0
        %v901 = vpop.trf.xlu0
        %v902 = vpop.trf.xlu0
        %v903 = vpop.trf.xlu0
        %v904 = vpop.trf.xlu0
        %v905 = vpop.trf.xlu0
        %v906 = vpop.trf.xlu0
        %v907 = vpop.trf.xlu0
        %v908 = vpop.trf.xlu0
        %v909 = vpop.trf.xlu0
        %v910 = vpop.trf.xlu0
        %v911 = vpop.trf.xlu0
        %v912 = vpop.trf.xlu0
        %v913 = vpop.trf.xlu0
        %v914 = vpop.trf.xlu0
        %915 = vxpose.xlu0.b32.start [1/16] %v434, 128
        %916 = vxpose.xlu0.b32.cont [2/16] 0.0, 128
        %917 = vxpose.xlu0.b32.cont [3/16] 0.0, 128
        %918 = vxpose.xlu0.b32.cont [4/16] 0.0, 128
        %919 = vxpose.xlu0.b32.cont [5/16] 0.0, 128
        %920 = vxpose.xlu0.b32.cont [6/16] 0.0, 128
        %921 = vxpose.xlu0.b32.cont [7/16] 0.0, 128
        %922 = vxpose.xlu0.b32.cont [8/16] 0.0, 128
        %923 = vxpose.xlu0.b32.cont [9/16] 0.0, 128
        %924 = vxpose.xlu0.b32.cont [10/16] 0.0, 128
        %925 = vxpose.xlu0.b32.cont [11/16] 0.0, 128
        %926 = vxpose.xlu0.b32.cont [12/16] 0.0, 128
        %927 = vxpose.xlu0.b32.cont [13/16] 0.0, 128
        %928 = vxpose.xlu0.b32.cont [14/16] 0.0, 128
        %929 = vxpose.xlu0.b32.cont [15/16] 0.0, 128
        %930 = vxpose.xlu0.b32.end [16/16] 0.0, 128
        %v931 = vpop.trf.xlu0
        %v932 = vpop.trf.xlu0
        %v933 = vpop.trf.xlu0
        %v934 = vpop.trf.xlu0
        %v935 = vpop.trf.xlu0
        %v936 = vpop.trf.xlu0
        %v937 = vpop.trf.xlu0
        %v938 = vpop.trf.xlu0
        %v939 = vpop.trf.xlu0
        %v940 = vpop.trf.xlu0
        %v941 = vpop.trf.xlu0
        %v942 = vpop.trf.xlu0
        %v943 = vpop.trf.xlu0
        %v944 = vpop.trf.xlu0
        %v945 = vpop.trf.xlu0
        %v946 = vpop.trf.xlu0
        %v947 = vcombine.low %v451, %v515
        %v948 = vcombine.high %v451, %v515
        %v950 = vunpack.c.l.s4 1983009808
        %v951 = vunpack.c.0.s8 %v950
        %v952 = vlaneseq
        %v953 = vshrl.u32 %v952, 7
        %v954 = vsub.s32 %v951, %v953
        %v955 = vrot.slane %v947, %v954
        %v957 = vunpack.c.l.s4 1983009808
        %v958 = vunpack.c.0.s8 %v957
        %v959 = vlaneseq
        %v960 = vshrl.u32 %v959, 7
        %v961 = vsub.s32 %v958, %v960
        %v962 = vrot.slane %v948, %v961
        %v963 = vcombine.low %v483, %v547
        %v964 = vcombine.high %v483, %v547
        %v966 = vunpack.c.l.s4 1983009808
        %v967 = vunpack.c.0.s8 %v966
        %v968 = vlaneseq
        %v969 = vshrl.u32 %v968, 7
        %v970 = vsub.s32 %v967, %v969
        %v971 = vrot.slane %v963, %v970
        %v973 = vunpack.c.l.s4 1983009808
        %v974 = vunpack.c.0.s8 %v973
        %v975 = vlaneseq
        %v976 = vshrl.u32 %v975, 7
        %v977 = vsub.s32 %v974, %v976
        %v978 = vrot.slane %v964, %v977
        %v979 = vcombine.low %v579, %v643
        %v980 = vcombine.high %v579, %v643
        %v982 = vunpack.c.l.s4 1983009808
        %v983 = vunpack.c.0.s8 %v982
        %v984 = vlaneseq
        %v985 = vshrl.u32 %v984, 7
        %v986 = vsub.s32 %v983, %v985
        %v987 = vrot.slane %v979, %v986
        %v989 = vunpack.c.l.s4 1983009808
        %v990 = vunpack.c.0.s8 %v989
        %v991 = vlaneseq
        %v992 = vshrl.u32 %v991, 7
        %v993 = vsub.s32 %v990, %v992
        %v994 = vrot.slane %v980, %v993
        %v995 = vcombine.low %v611, %v675
        %v996 = vcombine.high %v611, %v675
        %v998 = vunpack.c.l.s4 1983009808
        %v999 = vunpack.c.0.s8 %v998
        %v1000 = vlaneseq
        %v1001 = vshrl.u32 %v1000, 7
        %v1002 = vsub.s32 %v999, %v1001
        %v1003 = vrot.slane %v995, %v1002
        %v1005 = vunpack.c.l.s4 1983009808
        %v1006 = vunpack.c.0.s8 %v1005
        %v1007 = vlaneseq
        %v1008 = vshrl.u32 %v1007, 7
        %v1009 = vsub.s32 %v1006, %v1008
        %v1010 = vrot.slane %v996, %v1009
        %v1011 = vcombine.low %v955, %v971
        %v1012 = vcombine.high %v955, %v971
        %v1014 = vunpack.c.l.s4 1934713408
        %v1015 = vunpack.c.0.s8 %v1014
        %v1016 = vlaneseq
        %v1017 = vshrl.u32 %v1016, 7
        %v1018 = vsub.s32 %v1015, %v1017
        %v1019 = vrot.slane %v1011, %v1018
        %v1021 = vunpack.c.l.s4 1934713408
        %v1022 = vunpack.c.0.s8 %v1021
        %v1023 = vlaneseq
        %v1024 = vshrl.u32 %v1023, 7
        %v1025 = vsub.s32 %v1022, %v1024
        %v1026 = vrot.slane %v1012, %v1025
        %v1027 = vcombine.low %v962, %v978
        %v1028 = vcombine.high %v962, %v978
        %v1030 = vunpack.c.l.s4 1934713408
        %v1031 = vunpack.c.0.s8 %v1030
        %v1032 = vlaneseq
        %v1033 = vshrl.u32 %v1032, 7
        %v1034 = vsub.s32 %v1031, %v1033
        %v1035 = vrot.slane %v1027, %v1034
        %v1037 = vunpack.c.l.s4 1934713408
        %v1038 = vunpack.c.0.s8 %v1037
        %v1039 = vlaneseq
        %v1040 = vshrl.u32 %v1039, 7
        %v1041 = vsub.s32 %v1038, %v1040
        %v1042 = vrot.slane %v1028, %v1041
        %v1043 = vcombine.low %v987, %v1003
        %v1044 = vcombine.high %v987, %v1003
        %v1046 = vunpack.c.l.s4 1934713408
        %v1047 = vunpack.c.0.s8 %v1046
        %v1048 = vlaneseq
        %v1049 = vshrl.u32 %v1048, 7
        %v1050 = vsub.s32 %v1047, %v1049
        %v1051 = vrot.slane %v1043, %v1050
        %v1053 = vunpack.c.l.s4 1934713408
        %v1054 = vunpack.c.0.s8 %v1053
        %v1055 = vlaneseq
        %v1056 = vshrl.u32 %v1055, 7
        %v1057 = vsub.s32 %v1054, %v1056
        %v1058 = vrot.slane %v1044, %v1057
        %v1059 = vcombine.low %v994, %v1010
        %v1060 = vcombine.high %v994, %v1010
        %v1062 = vunpack.c.l.s4 1934713408
        %v1063 = vunpack.c.0.s8 %v1062
        %v1064 = vlaneseq
        %v1065 = vshrl.u32 %v1064, 7
        %v1066 = vsub.s32 %v1063, %v1065
        %v1067 = vrot.slane %v1059, %v1066
        %v1069 = vunpack.c.l.s4 1934713408
        %v1070 = vunpack.c.0.s8 %v1069
        %v1071 = vlaneseq
        %v1072 = vshrl.u32 %v1071, 7
        %v1073 = vsub.s32 %v1070, %v1072
        %v1074 = vrot.slane %v1060, %v1073
        %v1075 = vcombine.low %v1019, %v1051
        %v1076 = vcombine.high %v1019, %v1051
        %v1077 = vcombine.low %v1026, %v1058
        %v1078 = vcombine.high %v1026, %v1058
        %v1079 = vcombine.low %v1035, %v1067
        %v1080 = vcombine.high %v1035, %v1067
        %v1081 = vcombine.low %v1042, %v1074
        %v1082 = vcombine.high %v1042, %v1074
        %v1083 = vcombine.low %v707, %v771
        %v1084 = vcombine.high %v707, %v771
        %v1086 = vunpack.c.l.s4 1983009808
        %v1087 = vunpack.c.0.s8 %v1086
        %v1088 = vlaneseq
        %v1089 = vshrl.u32 %v1088, 7
        %v1090 = vsub.s32 %v1087, %v1089
        %v1091 = vrot.slane %v1083, %v1090
        %v1093 = vunpack.c.l.s4 1983009808
        %v1094 = vunpack.c.0.s8 %v1093
        %v1095 = vlaneseq
        %v1096 = vshrl.u32 %v1095, 7
        %v1097 = vsub.s32 %v1094, %v1096
        %v1098 = vrot.slane %v1084, %v1097
        %v1099 = vcombine.low %v739, %v803
        %v1100 = vcombine.high %v739, %v803
        %v1102 = vunpack.c.l.s4 1983009808
        %v1103 = vunpack.c.0.s8 %v1102
        %v1104 = vlaneseq
        %v1105 = vshrl.u32 %v1104, 7
        %v1106 = vsub.s32 %v1103, %v1105
        %v1107 = vrot.slane %v1099, %v1106
        %v1109 = vunpack.c.l.s4 1983009808
        %v1110 = vunpack.c.0.s8 %v1109
        %v1111 = vlaneseq
        %v1112 = vshrl.u32 %v1111, 7
        %v1113 = vsub.s32 %v1110, %v1112
        %v1114 = vrot.slane %v1100, %v1113
        %v1115 = vcombine.low %v835, %v899
        %v1116 = vcombine.high %v835, %v899
        %v1118 = vunpack.c.l.s4 1983009808
        %v1119 = vunpack.c.0.s8 %v1118
        %v1120 = vlaneseq
        %v1121 = vshrl.u32 %v1120, 7
        %v1122 = vsub.s32 %v1119, %v1121
        %v1123 = vrot.slane %v1115, %v1122
        %v1125 = vunpack.c.l.s4 1983009808
        %v1126 = vunpack.c.0.s8 %v1125
        %v1127 = vlaneseq
        %v1128 = vshrl.u32 %v1127, 7
        %v1129 = vsub.s32 %v1126, %v1128
        %v1130 = vrot.slane %v1116, %v1129
        %v1131 = vcombine.low %v867, %v931
        %v1132 = vcombine.high %v867, %v931
        %v1134 = vunpack.c.l.s4 1983009808
        %v1135 = vunpack.c.0.s8 %v1134
        %v1136 = vlaneseq
        %v1137 = vshrl.u32 %v1136, 7
        %v1138 = vsub.s32 %v1135, %v1137
        %v1139 = vrot.slane %v1131, %v1138
        %v1141 = vunpack.c.l.s4 1983009808
        %v1142 = vunpack.c.0.s8 %v1141
        %v1143 = vlaneseq
        %v1144 = vshrl.u32 %v1143, 7
        %v1145 = vsub.s32 %v1142, %v1144
        %v1146 = vrot.slane %v1132, %v1145
        %v1147 = vcombine.low %v1091, %v1107
        %v1148 = vcombine.high %v1091, %v1107
        %v1150 = vunpack.c.l.s4 1934713408
        %v1151 = vunpack.c.0.s8 %v1150
        %v1152 = vlaneseq
        %v1153 = vshrl.u32 %v1152, 7
        %v1154 = vsub.s32 %v1151, %v1153
        %v1155 = vrot.slane %v1147, %v1154
        %v1157 = vunpack.c.l.s4 1934713408
        %v1158 = vunpack.c.0.s8 %v1157
        %v1159 = vlaneseq
        %v1160 = vshrl.u32 %v1159, 7
        %v1161 = vsub.s32 %v1158, %v1160
        %v1162 = vrot.slane %v1148, %v1161
        %v1163 = vcombine.low %v1098, %v1114
        %v1164 = vcombine.high %v1098, %v1114
        %v1166 = vunpack.c.l.s4 1934713408
        %v1167 = vunpack.c.0.s8 %v1166
        %v1168 = vlaneseq
        %v1169 = vshrl.u32 %v1168, 7
        %v1170 = vsub.s32 %v1167, %v1169
        %v1171 = vrot.slane %v1163, %v1170
        %v1173 = vunpack.c.l.s4 1934713408
        %v1174 = vunpack.c.0.s8 %v1173
        %v1175 = vlaneseq
        %v1176 = vshrl.u32 %v1175, 7
        %v1177 = vsub.s32 %v1174, %v1176
        %v1178 = vrot.slane %v1164, %v1177
        %v1179 = vcombine.low %v1123, %v1139
        %v1180 = vcombine.high %v1123, %v1139
        %v1182 = vunpack.c.l.s4 1934713408
        %v1183 = vunpack.c.0.s8 %v1182
        %v1184 = vlaneseq
        %v1185 = vshrl.u32 %v1184, 7
        %v1186 = vsub.s32 %v1183, %v1185
        %v1187 = vrot.slane %v1179, %v1186
        %v1189 = vunpack.c.l.s4 1934713408
        %v1190 = vunpack.c.0.s8 %v1189
        %v1191 = vlaneseq
        %v1192 = vshrl.u32 %v1191, 7
        %v1193 = vsub.s32 %v1190, %v1192
        %v1194 = vrot.slane %v1180, %v1193
        %v1195 = vcombine.low %v1130, %v1146
        %v1196 = vcombine.high %v1130, %v1146
        %v1198 = vunpack.c.l.s4 1934713408
        %v1199 = vunpack.c.0.s8 %v1198
        %v1200 = vlaneseq
        %v1201 = vshrl.u32 %v1200, 7
        %v1202 = vsub.s32 %v1199, %v1201
        %v1203 = vrot.slane %v1195, %v1202
        %v1205 = vunpack.c.l.s4 1934713408
        %v1206 = vunpack.c.0.s8 %v1205
        %v1207 = vlaneseq
        %v1208 = vshrl.u32 %v1207, 7
        %v1209 = vsub.s32 %v1206, %v1208
        %v1210 = vrot.slane %v1196, %v1209
        %v1211 = vcombine.low %v1155, %v1187
        %v1212 = vcombine.high %v1155, %v1187
        %v1213 = vcombine.low %v1162, %v1194
        %v1214 = vcombine.high %v1162, %v1194
        %v1215 = vcombine.low %v1171, %v1203
        %v1216 = vcombine.high %v1171, %v1203
        %v1217 = vcombine.low %v1178, %v1210
        %v1218 = vcombine.high %v1178, %v1210
        %v1219 = vcombine.low %v452, %v516
        %v1220 = vcombine.high %v452, %v516
        %v1222 = vunpack.c.l.s4 1983009808
        %v1223 = vunpack.c.0.s8 %v1222
        %v1224 = vlaneseq
        %v1225 = vshrl.u32 %v1224, 7
        %v1226 = vsub.s32 %v1223, %v1225
        %v1227 = vrot.slane %v1219, %v1226
        %v1229 = vunpack.c.l.s4 1983009808
        %v1230 = vunpack.c.0.s8 %v1229
        %v1231 = vlaneseq
        %v1232 = vshrl.u32 %v1231, 7
        %v1233 = vsub.s32 %v1230, %v1232
        %v1234 = vrot.slane %v1220, %v1233
        %v1235 = vcombine.low %v484, %v548
        %v1236 = vcombine.high %v484, %v548
        %v1238 = vunpack.c.l.s4 1983009808
        %v1239 = vunpack.c.0.s8 %v1238
        %v1240 = vlaneseq
        %v1241 = vshrl.u32 %v1240, 7
        %v1242 = vsub.s32 %v1239, %v1241
        %v1243 = vrot.slane %v1235, %v1242
        %v1245 = vunpack.c.l.s4 1983009808
        %v1246 = vunpack.c.0.s8 %v1245
        %v1247 = vlaneseq
        %v1248 = vshrl.u32 %v1247, 7
        %v1249 = vsub.s32 %v1246, %v1248
        %v1250 = vrot.slane %v1236, %v1249
        %v1251 = vcombine.low %v580, %v644
        %v1252 = vcombine.high %v580, %v644
        %v1254 = vunpack.c.l.s4 1983009808
        %v1255 = vunpack.c.0.s8 %v1254
        %v1256 = vlaneseq
        %v1257 = vshrl.u32 %v1256, 7
        %v1258 = vsub.s32 %v1255, %v1257
        %v1259 = vrot.slane %v1251, %v1258
        %v1261 = vunpack.c.l.s4 1983009808
        %v1262 = vunpack.c.0.s8 %v1261
        %v1263 = vlaneseq
        %v1264 = vshrl.u32 %v1263, 7
        %v1265 = vsub.s32 %v1262, %v1264
        %v1266 = vrot.slane %v1252, %v1265
        %v1267 = vcombine.low %v612, %v676
        %v1268 = vcombine.high %v612, %v676
        %v1270 = vunpack.c.l.s4 1983009808
        %v1271 = vunpack.c.0.s8 %v1270
        %v1272 = vlaneseq
        %v1273 = vshrl.u32 %v1272, 7
        %v1274 = vsub.s32 %v1271, %v1273
        %v1275 = vrot.slane %v1267, %v1274
        %v1277 = vunpack.c.l.s4 1983009808
        %v1278 = vunpack.c.0.s8 %v1277
        %v1279 = vlaneseq
        %v1280 = vshrl.u32 %v1279, 7
        %v1281 = vsub.s32 %v1278, %v1280
        %v1282 = vrot.slane %v1268, %v1281
        %v1283 = vcombine.low %v1227, %v1243
        %v1284 = vcombine.high %v1227, %v1243
        %v1286 = vunpack.c.l.s4 1934713408
        %v1287 = vunpack.c.0.s8 %v1286
        %v1288 = vlaneseq
        %v1289 = vshrl.u32 %v1288, 7
        %v1290 = vsub.s32 %v1287, %v1289
        %v1291 = vrot.slane %v1283, %v1290
        %v1293 = vunpack.c.l.s4 1934713408
        %v1294 = vunpack.c.0.s8 %v1293
        %v1295 = vlaneseq
        %v1296 = vshrl.u32 %v1295, 7
        %v1297 = vsub.s32 %v1294, %v1296
        %v1298 = vrot.slane %v1284, %v1297
        %v1299 = vcombine.low %v1234, %v1250
        %v1300 = vcombine.high %v1234, %v1250
        %v1302 = vunpack.c.l.s4 1934713408
        %v1303 = vunpack.c.0.s8 %v1302
        %v1304 = vlaneseq
        %v1305 = vshrl.u32 %v1304, 7
        %v1306 = vsub.s32 %v1303, %v1305
        %v1307 = vrot.slane %v1299, %v1306
        %v1309 = vunpack.c.l.s4 1934713408
        %v1310 = vunpack.c.0.s8 %v1309
        %v1311 = vlaneseq
        %v1312 = vshrl.u32 %v1311, 7
        %v1313 = vsub.s32 %v1310, %v1312
        %v1314 = vrot.slane %v1300, %v1313
        %v1315 = vcombine.low %v1259, %v1275
        %v1316 = vcombine.high %v1259, %v1275
        %v1318 = vunpack.c.l.s4 1934713408
        %v1319 = vunpack.c.0.s8 %v1318
        %v1320 = vlaneseq
        %v1321 = vshrl.u32 %v1320, 7
        %v1322 = vsub.s32 %v1319, %v1321
        %v1323 = vrot.slane %v1315, %v1322
        %v1325 = vunpack.c.l.s4 1934713408
        %v1326 = vunpack.c.0.s8 %v1325
        %v1327 = vlaneseq
        %v1328 = vshrl.u32 %v1327, 7
        %v1329 = vsub.s32 %v1326, %v1328
        %v1330 = vrot.slane %v1316, %v1329
        %v1331 = vcombine.low %v1266, %v1282
        %v1332 = vcombine.high %v1266, %v1282
        %v1334 = vunpack.c.l.s4 1934713408
        %v1335 = vunpack.c.0.s8 %v1334
        %v1336 = vlaneseq
        %v1337 = vshrl.u32 %v1336, 7
        %v1338 = vsub.s32 %v1335, %v1337
        %v1339 = vrot.slane %v1331, %v1338
        %v1341 = vunpack.c.l.s4 1934713408
        %v1342 = vunpack.c.0.s8 %v1341
        %v1343 = vlaneseq
        %v1344 = vshrl.u32 %v1343, 7
        %v1345 = vsub.s32 %v1342, %v1344
        %v1346 = vrot.slane %v1332, %v1345
        %v1347 = vcombine.low %v1291, %v1323
        %v1348 = vcombine.high %v1291, %v1323
        %v1349 = vcombine.low %v1298, %v1330
        %v1350 = vcombine.high %v1298, %v1330
        %v1351 = vcombine.low %v1307, %v1339
        %v1352 = vcombine.high %v1307, %v1339
        %v1353 = vcombine.low %v1314, %v1346
        %v1354 = vcombine.high %v1314, %v1346
        %v1355 = vcombine.low %v708, %v772
        %v1356 = vcombine.high %v708, %v772
        %v1358 = vunpack.c.l.s4 1983009808
        %v1359 = vunpack.c.0.s8 %v1358
        %v1360 = vlaneseq
        %v1361 = vshrl.u32 %v1360, 7
        %v1362 = vsub.s32 %v1359, %v1361
        %v1363 = vrot.slane %v1355, %v1362
        %v1365 = vunpack.c.l.s4 1983009808
        %v1366 = vunpack.c.0.s8 %v1365
        %v1367 = vlaneseq
        %v1368 = vshrl.u32 %v1367, 7
        %v1369 = vsub.s32 %v1366, %v1368
        %v1370 = vrot.slane %v1356, %v1369
        %v1371 = vcombine.low %v740, %v804
        %v1372 = vcombine.high %v740, %v804
        %v1374 = vunpack.c.l.s4 1983009808
        %v1375 = vunpack.c.0.s8 %v1374
        %v1376 = vlaneseq
        %v1377 = vshrl.u32 %v1376, 7
        %v1378 = vsub.s32 %v1375, %v1377
        %v1379 = vrot.slane %v1371, %v1378
        %v1381 = vunpack.c.l.s4 1983009808
        %v1382 = vunpack.c.0.s8 %v1381
        %v1383 = vlaneseq
        %v1384 = vshrl.u32 %v1383, 7
        %v1385 = vsub.s32 %v1382, %v1384
        %v1386 = vrot.slane %v1372, %v1385
        %v1387 = vcombine.low %v836, %v900
        %v1388 = vcombine.high %v836, %v900
        %v1390 = vunpack.c.l.s4 1983009808
        %v1391 = vunpack.c.0.s8 %v1390
        %v1392 = vlaneseq
        %v1393 = vshrl.u32 %v1392, 7
        %v1394 = vsub.s32 %v1391, %v1393
        %v1395 = vrot.slane %v1387, %v1394
        %v1397 = vunpack.c.l.s4 1983009808
        %v1398 = vunpack.c.0.s8 %v1397
        %v1399 = vlaneseq
        %v1400 = vshrl.u32 %v1399, 7
        %v1401 = vsub.s32 %v1398, %v1400
        %v1402 = vrot.slane %v1388, %v1401
        %v1403 = vcombine.low %v868, %v932
        %v1404 = vcombine.high %v868, %v932
        %v1406 = vunpack.c.l.s4 1983009808
        %v1407 = vunpack.c.0.s8 %v1406
        %v1408 = vlaneseq
        %v1409 = vshrl.u32 %v1408, 7
        %v1410 = vsub.s32 %v1407, %v1409
        %v1411 = vrot.slane %v1403, %v1410
        %v1413 = vunpack.c.l.s4 1983009808
        %v1414 = vunpack.c.0.s8 %v1413
        %v1415 = vlaneseq
        %v1416 = vshrl.u32 %v1415, 7
        %v1417 = vsub.s32 %v1414, %v1416
        %v1418 = vrot.slane %v1404, %v1417
        %v1419 = vcombine.low %v1363, %v1379
        %v1420 = vcombine.high %v1363, %v1379
        %v1422 = vunpack.c.l.s4 1934713408
        %v1423 = vunpack.c.0.s8 %v1422
        %v1424 = vlaneseq
        %v1425 = vshrl.u32 %v1424, 7
        %v1426 = vsub.s32 %v1423, %v1425
        %v1427 = vrot.slane %v1419, %v1426
        %v1429 = vunpack.c.l.s4 1934713408
        %v1430 = vunpack.c.0.s8 %v1429
        %v1431 = vlaneseq
        %v1432 = vshrl.u32 %v1431, 7
        %v1433 = vsub.s32 %v1430, %v1432
        %v1434 = vrot.slane %v1420, %v1433
        %v1435 = vcombine.low %v1370, %v1386
        %v1436 = vcombine.high %v1370, %v1386
        %v1438 = vunpack.c.l.s4 1934713408
        %v1439 = vunpack.c.0.s8 %v1438
        %v1440 = vlaneseq
        %v1441 = vshrl.u32 %v1440, 7
        %v1442 = vsub.s32 %v1439, %v1441
        %v1443 = vrot.slane %v1435, %v1442
        %v1445 = vunpack.c.l.s4 1934713408
        %v1446 = vunpack.c.0.s8 %v1445
        %v1447 = vlaneseq
        %v1448 = vshrl.u32 %v1447, 7
        %v1449 = vsub.s32 %v1446, %v1448
        %v1450 = vrot.slane %v1436, %v1449
        %v1451 = vcombine.low %v1395, %v1411
        %v1452 = vcombine.high %v1395, %v1411
        %v1454 = vunpack.c.l.s4 1934713408
        %v1455 = vunpack.c.0.s8 %v1454
        %v1456 = vlaneseq
        %v1457 = vshrl.u32 %v1456, 7
        %v1458 = vsub.s32 %v1455, %v1457
        %v1459 = vrot.slane %v1451, %v1458
        %v1461 = vunpack.c.l.s4 1934713408
        %v1462 = vunpack.c.0.s8 %v1461
        %v1463 = vlaneseq
        %v1464 = vshrl.u32 %v1463, 7
        %v1465 = vsub.s32 %v1462, %v1464
        %v1466 = vrot.slane %v1452, %v1465
        %v1467 = vcombine.low %v1402, %v1418
        %v1468 = vcombine.high %v1402, %v1418
        %v1470 = vunpack.c.l.s4 1934713408
        %v1471 = vunpack.c.0.s8 %v1470
        %v1472 = vlaneseq
        %v1473 = vshrl.u32 %v1472, 7
        %v1474 = vsub.s32 %v1471, %v1473
        %v1475 = vrot.slane %v1467, %v1474
        %v1477 = vunpack.c.l.s4 1934713408
        %v1478 = vunpack.c.0.s8 %v1477
        %v1479 = vlaneseq
        %v1480 = vshrl.u32 %v1479, 7
        %v1481 = vsub.s32 %v1478, %v1480
        %v1482 = vrot.slane %v1468, %v1481
        %v1483 = vcombine.low %v1427, %v1459
        %v1484 = vcombine.high %v1427, %v1459
        %v1485 = vcombine.low %v1434, %v1466
        %v1486 = vcombine.high %v1434, %v1466
        %v1487 = vcombine.low %v1443, %v1475
        %v1488 = vcombine.high %v1443, %v1475
        %v1489 = vcombine.low %v1450, %v1482
        %v1490 = vcombine.high %v1450, %v1482
        %vm1491 = vcmask 31744
        %1492 = vst.msk [vmem:[%s162] sm:$0xff] %vm1491, %v1075
        %1493 = vst.msk [vmem:[%s162 + $0x8] sm:$0xff] %vm1491, %v1211
        %1494 = vst.msk [vmem:[%s162 + $0x10] sm:$0xff] %vm1491, %v1076
        %1495 = vst.msk [vmem:[%s162 + $0x18] sm:$0xff] %vm1491, %v1212
        %1496 = vst.msk [vmem:[%s162 + $0x20] sm:$0xff] %vm1491, %v1077
        %1497 = vst.msk [vmem:[%s162 + $0x28] sm:$0xff] %vm1491, %v1213
        %1498 = vst.msk [vmem:[%s162 + $0x30] sm:$0xff] %vm1491, %v1078
        %1499 = vst.msk [vmem:[%s162 + $0x38] sm:$0xff] %vm1491, %v1214
        %1500 = vst.msk [vmem:[%s162 + $0x40] sm:$0xff] %vm1491, %v1079
        %1501 = vst.msk [vmem:[%s162 + $0x48] sm:$0xff] %vm1491, %v1215
        %1502 = vst.msk [vmem:[%s162 + $0x50] sm:$0xff] %vm1491, %v1080
        %1503 = vst.msk [vmem:[%s162 + $0x58] sm:$0xff] %vm1491, %v1216
        %1504 = vst.msk [vmem:[%s162 + $0x60] sm:$0xff] %vm1491, %v1081
        %1505 = vst.msk [vmem:[%s162 + $0x68] sm:$0xff] %vm1491, %v1217
        %1506 = vst.msk [vmem:[%s162 + $0x70] sm:$0xff] %vm1491, %v1082
        %1507 = vst.msk [vmem:[%s162 + $0x78] sm:$0xff] %vm1491, %v1218
        %1508 = vst.msk [vmem:[%s162 + $0x80] sm:$0xff] %vm1491, %v1347
        %1509 = vst.msk [vmem:[%s162 + $0x88] sm:$0xff] %vm1491, %v1483
        %1510 = vst.msk [vmem:[%s162 + $0x90] sm:$0xff] %vm1491, %v1348
        %1511 = vst.msk [vmem:[%s162 + $0x98] sm:$0xff] %vm1491, %v1484
        %1512 = vst.msk [vmem:[%s162 + $0xa0] sm:$0xff] %vm1491, %v1349
        %1513 = vst.msk [vmem:[%s162 + $0xa8] sm:$0xff] %vm1491, %v1485
        %1514 = vst.msk [vmem:[%s162 + $0xb0] sm:$0xff] %vm1491, %v1350
        %1515 = vst.msk [vmem:[%s162 + $0xb8] sm:$0xff] %vm1491, %v1486
        %1516 = vst.msk [vmem:[%s162 + $0xc0] sm:$0xff] %vm1491, %v1351
        %1517 = vst.msk [vmem:[%s162 + $0xc8] sm:$0xff] %vm1491, %v1487
        %1518 = vst.msk [vmem:[%s162 + $0xd0] sm:$0xff] %vm1491, %v1352
        %1519 = vst.msk [vmem:[%s162 + $0xd8] sm:$0xff] %vm1491, %v1488
        %1520 = vst.msk [vmem:[%s162 + $0xe0] sm:$0xff] %vm1491, %v1353
        %1521 = vst.msk [vmem:[%s162 + $0xe8] sm:$0xff] %vm1491, %v1489
        %1522 = vst.msk [vmem:[%s162 + $0xf0] sm:$0xff] %vm1491, %v1354
        %1523 = vst.msk [vmem:[%s162 + $0xf8] sm:$0xff] %vm1491, %v1490
        %p1524 = scmp.lt.s32.totalorder %s19, 1
        %s1525 = scalar_select %p1524, %s19, 1
        %p1526 = scmp.lt.s32.totalorder %s20, 0
        %s1527 = scalar_select %p1526, %s20, 0
        %s1528 = smul.addr %s1525, 32
        %s1529 = sadd.s32 %s1527, %s1528
        %s1530 = smul.addr %s1529, 8
        %s1531 = scalar_lea.vmem %s1, %s1530
        // Predicated region
        $region29: #{tpu_custom_call.1} parent=23 // pred_check
          %p1532 = pneg %p75
        $region30: #{tpu_custom_call.1} parent=23 // pred_check_branch
          %1534 = sbr.rel (%p1532) target = $region32
        $region31: #{tpu_custom_call.1} parent=23 // pred_region
          _
        $region32: #{tpu_custom_call.1} parent=23 // pred_fallthru
          _
      $region24: #{tpu_custom_call.1} parent=5 // pred_fallthru
        _
      %p1535 = scmp.le.s32.totalorder 2, %s10
      // Predicated region
      $region33: #{tpu_custom_call.1} parent=5 // pred_check
        %p1536 = pneg %p1535
      $region34: #{tpu_custom_call.1} parent=5 // pred_check_branch
        %1538 = sbr.rel (%p1536) target = $region36
      $region35: #{tpu_custom_call.1} parent=5 // pred_region
        %s1539 = ssub.s32 %s10, 2
        // Predicated region
        $region37: #{tpu_custom_call.1} parent=35 // pred_check
          %p1540 = pneg %p81
        $region38: #{tpu_custom_call.1} parent=35 // pred_check_branch
          %1542 = sbr.rel (%p1540) target = $region40
        $region39: #{tpu_custom_call.1} parent=35 // pred_region
          %p1543 = scmp.lt.s32.totalorder %s21, 1
          %s1544 = scalar_select %p1543, %s21, 1
          %p1545 = scmp.lt.s32.totalorder %s22, 0
          %s1546 = scalar_select %p1545, %s22, 0
          %s1547 = smul.addr %s1544, 32
          %s1548 = sadd.s32 %s1546, %s1547
          %s1549 = smul.addr %s1548, 8
          %s1550 = scalar_lea.vmem %s1, %s1549
        $region40: #{tpu_custom_call.1} parent=35 // pred_fallthru
          _
      $region36: #{tpu_custom_call.1} parent=5 // pred_fallthru
        _
    $region6: #{tpu_custom_call.1} parent=1 // loop_footer
      %s14 = sadd.s32 1, %s10
    $region7: #{tpu_custom_call.1} parent=1 // loop_footer_branch
      %9 = sbr.rel target = $region3
    $region8: #{tpu_custom_call.1} parent=1 // loop_exit
      _
    %1551 = vsyncpa [#allocation3], 1
    %s1552 = scalar_lea.sflag [#allocation3], 1
    %1553 = vsyncpa %s1552, 1

</llo_original>
